<compile_context>
chip_gen: v7x
topology: tpu7x:2x2x1
jax: 0.10.0
libtpu: 0.0.40
codegen_flags: <defaults>
</compile_context>

<pallas_src>
import jax
import jax.numpy as jnp
from jax.experimental import pallas as pl
from jax.experimental.pallas import tpu as pltpu


def _critic_kernel(x_ref, w1_ref, b1_ref, w2_ref, b2_ref, w3_ref, b3_ref,
                   out_ref):
    # fc1: bf16 MXU matmul, f32 accumulate; bias + ReLU in f32 on the VPU.
    x = x_ref[...].astype(jnp.bfloat16)                          # (TB, S)
    h1 = jnp.dot(x, w1_ref[...], preferred_element_type=jnp.float32)
    h1 = jnp.maximum(h1 + b1_ref[...], 0.0)                      # (TB, H) f32

    # fc2: bf16 MXU matmul, f32 accumulate; bias + ReLU in f32.
    h2 = jnp.dot(h1.astype(jnp.bfloat16), w2_ref[...],
                 preferred_element_type=jnp.float32)
    h2 = jnp.maximum(h2 + b2_ref[...], 0.0)                      # (TB, H) f32

    # fc_value (output width 1): VPU multiply + XLU lane reduction instead of
    # an MXU matmul with a single live result column.  (Only at TB >= 1024
    # would this start competing with vmatmul for the shared vex slots, in
    # which case a padded MXU pass wins; TB is capped at 512 here.)
    v = jnp.sum(h2 * w3_ref[...], axis=-1, keepdims=True)        # (TB, 1) f32
    out_ref[...] = (v + b3_ref[...]).astype(out_ref.dtype)


def prepare_critic_params(w1, b1, w2, b2, w3, b3):
    """One-time conversion of PyTorch-convention params into kernel layout.

    nn.Linear stores weights as [out, in]: w1 [H, S], w2 [H, H], w3 [1, H].
    Returns w1/w2 pre-transposed to [in, out] and cast to bf16 for the MXU,
    biases as [1, out] f32 rows, fc_value weight as a [1, H] f32 row, and the
    fc_value bias as a (1, 1) f32 block.  (Hoisted out of the per-call path.)
    """
    hidden = w1.shape[0]
    return dict(
        w1=jnp.transpose(w1).astype(jnp.bfloat16),               # [S, H]
        b1=jnp.asarray(b1, jnp.float32).reshape(1, hidden),
        w2=jnp.transpose(w2).astype(jnp.bfloat16),               # [H, H]
        b2=jnp.asarray(b2, jnp.float32).reshape(1, hidden),
        w3=jnp.asarray(w3, jnp.float32).reshape(1, hidden),      # value row
        b3=jnp.asarray(b3, jnp.float32).reshape(1, 1),
    )


def _choose_batch_tile(B, block_batch):
    """Pick the batch tile TB.

    - B <= block_batch: a single full-array tile (layout-rule safe for any B).
    - B  > block_batch: a multiple-of-8 tile sized so the grid has an EVEN
      number of steps, so v7x's two TensorCores ("parallel" axis) each get
      balanced work.  Harmless on single-TC v5e/v6e.
    """
    if B <= block_batch:
        return B
    steps = pl.cdiv(B, block_batch)
    if steps % 2 == 1:
        steps += 1
    tb = -(-B // steps)          # cdiv
    tb = ((tb + 7) // 8) * 8     # round up to sublane multiple
    return tb


def critic_forward(state, params, *, block_batch=512):
    """state: [B, state_dim] f32; params: output of prepare_critic_params.

    Returns value: [B, 1] f32 (same semantics as Critic.forward).
    """
    assert block_batch % 8 == 0
    B, S = state.shape
    H = params["w1"].shape[1]

    TB = _choose_batch_tile(B, block_batch)
    grid = (pl.cdiv(B, TB),)

    # Weights/biases: full-array blocks with a constant index_map -> DMA'd
    # once, VMEM-resident across all batch tiles.  Single-buffered since the
    # block index never changes (no point double-buffering a constant block).
    def resident(shape):
        return pl.BlockSpec(shape, lambda i: (0,) * len(shape),
                            pipeline_mode=pl.Buffered(1))

    return pl.pallas_call(
        _critic_kernel,
        out_shape=jax.ShapeDtypeStruct((B, 1), jnp.float32),
        grid=grid,
        in_specs=[
            pl.BlockSpec((TB, S), lambda i: (i, 0)),   # state: streamed tiles
            resident((S, H)),                          # w1 (bf16), resident
            resident((1, H)),                          # b1 (f32)
            resident((H, H)),                          # w2 (bf16), resident
            resident((1, H)),                          # b2 (f32)
            resident((1, H)),                          # fc_value weight row
            resident((1, 1)),                          # fc_value bias
        ],
        out_specs=pl.BlockSpec((TB, 1), lambda i: (i, 0)),
        compiler_params=pltpu.CompilerParams(
            dimension_semantics=("parallel",)),        # v7x: shard over 2 TCs
    )(state, params["w1"], params["b1"], params["w2"], params["b2"],
      params["w3"], params["b3"])


def _init_linear(key, out_dim, in_dim):
    # Deterministic synthetic init (PyTorch-like uniform fan-in scaling).
    kw, kb = jax.random.split(key)
    bound = 1.0 / jnp.sqrt(jnp.float32(in_dim))
    w = jax.random.uniform(kw, (out_dim, in_dim), jnp.float32, -bound, bound)
    b = jax.random.uniform(kb, (out_dim,), jnp.float32, -bound, bound)
    return w, b


if __name__ == "__main__":
    key = jax.random.PRNGKey(0)
    k_state, k1, k2, k3 = jax.random.split(key, 4)

    batch = 1024         # two 512-row batch tiles -> exercises the pipeline
    state_dim = 24
    hidden_dim = 256     # module default

    state = jax.random.normal(k_state, (batch, state_dim), jnp.float32)
    w1, b1 = _init_linear(k1, hidden_dim, state_dim)
    w2, b2 = _init_linear(k2, hidden_dim, hidden_dim)
    w3, b3 = _init_linear(k3, 1, hidden_dim)

    params = prepare_critic_params(w1, b1, w2, b2, w3, b3)   # one-time prep
    value = critic_forward(state, params)                    # TB = 512
    value = jax.block_until_ready(value)

    # Pure-JAX f32 reference.  Kernel uses bf16 MXU inputs with f32
    # accumulation, so allow a small numerical tolerance.
    h = jnp.maximum(state @ w1.T + b1, 0.0)
    h = jnp.maximum(h @ w2.T + b2, 0.0)
    ref = h @ w3.T + b3
    assert value.shape == (batch, 1)
    assert jnp.allclose(value, ref, atol=2e-2, rtol=2e-2), (
        float(jnp.max(jnp.abs(value - ref))))

    print("KERNEL_OK")
</pallas_src>

<mosaic_0001>
module attributes {stable_mosaic.version = 11 : i64} {
  func.func @_critic_kernel(%arg0: i32, %arg1: memref<512x24xf32, #tpu.memory_space<vmem>>, %arg2: memref<24x256xbf16, #tpu.memory_space<vmem>>, %arg3: memref<1x256xf32, #tpu.memory_space<vmem>>, %arg4: memref<256x256xbf16, #tpu.memory_space<vmem>>, %arg5: memref<1x256xf32, #tpu.memory_space<vmem>>, %arg6: memref<1x256xf32, #tpu.memory_space<vmem>>, %arg7: memref<1x1xf32, #tpu.memory_space<vmem>>, %arg8: memref<512x1xf32, #tpu.memory_space<vmem>>) attributes {dimension_semantics = [#tpu.dimension_semantics<parallel>], iteration_bounds = array<i64: 2>, scalar_prefetch = 0 : i64, scratch_operands = 0 : i64, tpu.core_type = #tpu.core_type<tc>, window_params = [{transform_indices = @transform_0, window_bounds = array<i64: 512, 24>}, {pipeline_mode = #tpu.pipeline_mode<synchronous>, transform_indices = @transform_1, window_bounds = array<i64: 24, 256>}, {pipeline_mode = #tpu.pipeline_mode<synchronous>, transform_indices = @transform_2, window_bounds = array<i64: 1, 256>}, {pipeline_mode = #tpu.pipeline_mode<synchronous>, transform_indices = @transform_3, window_bounds = array<i64: 256, 256>}, {pipeline_mode = #tpu.pipeline_mode<synchronous>, transform_indices = @transform_4, window_bounds = array<i64: 1, 256>}, {pipeline_mode = #tpu.pipeline_mode<synchronous>, transform_indices = @transform_5, window_bounds = array<i64: 1, 256>}, {pipeline_mode = #tpu.pipeline_mode<synchronous>, transform_indices = @transform_6, window_bounds = array<i64: 1, 1>}, {transform_indices = @transform_7, window_bounds = array<i64: 512, 1>}]} {
    %c0 = arith.constant 0 : index
    %c0_0 = arith.constant 0 : index
    %0 = vector.load %arg1[%c0, %c0_0] : memref<512x24xf32, #tpu.memory_space<vmem>>, vector<512x24xf32>
    %1 = arith.truncf %0 : vector<512x24xf32> to vector<512x24xbf16>
    %c0_1 = arith.constant 0 : index
    %c0_2 = arith.constant 0 : index
    %2 = vector.load %arg2[%c0_1, %c0_2] : memref<24x256xbf16, #tpu.memory_space<vmem>>, vector<24x256xbf16>
    %cst = arith.constant dense<0.000000e+00> : vector<512x256xf32>
    %3 = tpu.matmul %1, %2, %cst {dimension_numbers = #tpu.dot_dimension_numbers<[1], [0], [0], [1], [0, 0, 1, 1], [], []>} : vector<512x24xbf16>, vector<24x256xbf16>, vector<512x256xf32> -> vector<512x256xf32>
    %c0_3 = arith.constant 0 : index
    %c0_4 = arith.constant 0 : index
    %4 = vector.load %arg3[%c0_3, %c0_4] : memref<1x256xf32, #tpu.memory_space<vmem>>, vector<1x256xf32>
    %5 = vector.broadcast %4 : vector<1x256xf32> to vector<512x256xf32>
    %6 = arith.addf %3, %5 : vector<512x256xf32>
    %cst_5 = arith.constant 0.000000e+00 : f32
    %7 = vector.broadcast %cst_5 : f32 to vector<512x256xf32>
    %8 = arith.maximumf %6, %7 : vector<512x256xf32>
    %9 = arith.truncf %8 : vector<512x256xf32> to vector<512x256xbf16>
    %c0_6 = arith.constant 0 : index
    %c0_7 = arith.constant 0 : index
    %10 = vector.load %arg4[%c0_6, %c0_7] : memref<256x256xbf16, #tpu.memory_space<vmem>>, vector<256x256xbf16>
    %cst_8 = arith.constant dense<0.000000e+00> : vector<512x256xf32>
    %11 = tpu.matmul %9, %10, %cst_8 {dimension_numbers = #tpu.dot_dimension_numbers<[1], [0], [0], [1], [0, 0, 1, 1], [], []>} : vector<512x256xbf16>, vector<256x256xbf16>, vector<512x256xf32> -> vector<512x256xf32>
    %c0_9 = arith.constant 0 : index
    %c0_10 = arith.constant 0 : index
    %12 = vector.load %arg5[%c0_9, %c0_10] : memref<1x256xf32, #tpu.memory_space<vmem>>, vector<1x256xf32>
    %13 = vector.broadcast %12 : vector<1x256xf32> to vector<512x256xf32>
    %14 = arith.addf %11, %13 : vector<512x256xf32>
    %cst_11 = arith.constant 0.000000e+00 : f32
    %15 = vector.broadcast %cst_11 : f32 to vector<512x256xf32>
    %16 = arith.maximumf %14, %15 : vector<512x256xf32>
    %c0_12 = arith.constant 0 : index
    %c0_13 = arith.constant 0 : index
    %17 = vector.load %arg6[%c0_12, %c0_13] : memref<1x256xf32, #tpu.memory_space<vmem>>, vector<1x256xf32>
    %18 = vector.broadcast %17 : vector<1x256xf32> to vector<512x256xf32>
    %19 = arith.mulf %16, %18 : vector<512x256xf32>
    %cst_14 = arith.constant dense<0.000000e+00> : vector<512xf32>
    %20 = vector.multi_reduction <add>, %19, %cst_14 [1] : vector<512x256xf32> to vector<512xf32>
    %21 = vector.shape_cast %20 : vector<512xf32> to vector<512x1xf32>
    %c0_15 = arith.constant 0 : index
    %c0_16 = arith.constant 0 : index
    %22 = vector.load %arg7[%c0_15, %c0_16] : memref<1x1xf32, #tpu.memory_space<vmem>>, vector<1x1xf32>
    %23 = vector.broadcast %22 : vector<1x1xf32> to vector<512x1xf32>
    %24 = arith.addf %21, %23 : vector<512x1xf32>
    %c0_17 = arith.constant 0 : index
    %c0_18 = arith.constant 0 : index
    %25 = vector.load %arg8[%c0_17, %c0_18] : memref<512x1xf32, #tpu.memory_space<vmem>>, vector<512x1xf32>
    tpu.vector_store %arg8[%c0_17, %c0_18], %24 {strides = array<i32>} : memref<512x1xf32, #tpu.memory_space<vmem>>, vector<512x1xf32>,
    return
  }
  func.func @transform_0(%arg0: i32) -> (i32, i32) {
    %c0_i32 = arith.constant 0 : i32
    %c0_i32_0 = arith.constant 0 : i32
    return %arg0, %c0_i32 : i32, i32
  }
  func.func @transform_1(%arg0: i32) -> (i32, i32) {
    %c0_i32 = arith.constant 0 : i32
    %c0_i32_0 = arith.constant 0 : i32
    %c0_i32_1 = arith.constant 0 : i32
    return %c0_i32, %c0_i32_0 : i32, i32
  }
  func.func @transform_2(%arg0: i32) -> (i32, i32) {
    %c0_i32 = arith.constant 0 : i32
    %c0_i32_0 = arith.constant 0 : i32
    %c0_i32_1 = arith.constant 0 : i32
    return %c0_i32, %c0_i32_0 : i32, i32
  }
  func.func @transform_3(%arg0: i32) -> (i32, i32) {
    %c0_i32 = arith.constant 0 : i32
    %c0_i32_0 = arith.constant 0 : i32
    %c0_i32_1 = arith.constant 0 : i32
    return %c0_i32, %c0_i32_0 : i32, i32
  }
  func.func @transform_4(%arg0: i32) -> (i32, i32) {
    %c0_i32 = arith.constant 0 : i32
    %c0_i32_0 = arith.constant 0 : i32
    %c0_i32_1 = arith.constant 0 : i32
    return %c0_i32, %c0_i32_0 : i32, i32
  }
  func.func @transform_5(%arg0: i32) -> (i32, i32) {
    %c0_i32 = arith.constant 0 : i32
    %c0_i32_0 = arith.constant 0 : i32
    %c0_i32_1 = arith.constant 0 : i32
    return %c0_i32, %c0_i32_0 : i32, i32
  }
  func.func @transform_6(%arg0: i32) -> (i32, i32) {
    %c0_i32 = arith.constant 0 : i32
    %c0_i32_0 = arith.constant 0 : i32
    %c0_i32_1 = arith.constant 0 : i32
    return %c0_i32, %c0_i32_0 : i32, i32
  }
  func.func @transform_7(%arg0: i32) -> (i32, i32) {
    %c0_i32 = arith.constant 0 : i32
    %c0_i32_0 = arith.constant 0 : i32
    return %arg0, %c0_i32 : i32, i32
  }
}

</mosaic_0001>

<llo_original>
// kernel: tpu_custom_call.1
$region0: #{tpu_custom_call.1}
  #allocation0 [shape = 'u32[]', space=smem, size = 0x4, offset = 0x4, fixed_abs, tag = 'smem constant byte address 0x4 - core index']
  #allocation1 [shape = 'u32[144,128]{1,0:T(1,128)}', space=vmem, size = 0x12000, scoped, tag = 'internal scratch']
  #allocation2 [shape = 'f32[1,1]{1,0:T(1,128)S(1)}', space=vmem, size = 0x200, scoped, tag = 'scoped memory for tpu_custom_call.1']
  %s0 = inlined_call_operand.vmem [shape: f32[1024,24], index: 0, kind: input, shape index: {}]
  %s1 = inlined_call_operand.vmem [shape: bf16[24,256], index: 1, kind: input, shape index: {}]
  %s2 = inlined_call_operand.vmem [shape: f32[1,256], index: 2, kind: input, shape index: {}]
  %s3 = inlined_call_operand.vmem [shape: bf16[256,256], index: 3, kind: input, shape index: {}]
  %s4 = inlined_call_operand.vmem [shape: f32[1,256], index: 4, kind: input, shape index: {}]
  %s5 = inlined_call_operand.vmem [shape: f32[1,256], index: 5, kind: input, shape index: {}]
  %s6 = inlined_call_operand.<no memory space> [shape: f32[1,1], index: 6, kind: input, shape index: {}]
  %s7 = inlined_call_operand.vmem [shape: f32[1024,1], index: 7, kind: output, shape index: {}]
  %s8 = sld [smem:[#allocation0]]
  $region61: #{tpu_custom_call.1} parent=0
    _
  %s10 = ssub.s32 1, %s8
  %s11 = scalar_select 0, %s10, %s8
  %v12 = vstv %s6
  %13 = vst [vmem:[#allocation2] sm:$0x1] %v12
  loop: start=0, step=1, limit=4
  $region2: #{tpu_custom_call.1} parent=0 // loop_pre_header
    _
  $region3: #{tpu_custom_call.1} parent=0 // loop_header
    %s15 = sphi 0, %s19
    %p16 = scmp.ge.s32.totalorder %s15, 4
    %s25 = sphi 0, %s27
    %s28 = sphi 0, %s25
    %s29 = sphi 0, %s28
    %s45 = sphi 0, %s29
    %s49 = sphi 0, %s49
    %s51 = sphi 0, %s49
    %s52 = sphi 0, %s51
    %s66 = sphi 0, %s52
    %s70 = sphi 0, %s70
    %s72 = sphi 0, %s70
    %s73 = sphi 0, %s72
    %s87 = sphi 0, %s73
    %s91 = sphi 0, %s91
    %s93 = sphi 0, %s91
    %s94 = sphi 0, %s93
    %s108 = sphi 0, %s94
    %s112 = sphi 0, %s112
    %s114 = sphi 0, %s112
    %s115 = sphi 0, %s114
    %s129 = sphi 0, %s115
    %s133 = sphi 0, %s133
    %s135 = sphi 0, %s133
    %s136 = sphi 0, %s135
    %s150 = sphi 0, %s136
    %s154 = sphi 0, %s154
    %s156 = sphi 0, %s154
    %s157 = sphi 0, %s156
    %s171 = sphi 0, %s157
    %s177 = sphi 0, %s179
    %s180 = sphi 0, %s177
    %s181 = sphi 0, %s180
    %s197 = sphi 0, %s181
  $region4: #{tpu_custom_call.1} parent=0 // loop_header_branch
    %18 = sbr.rel (%p16) target = $region8
  $region5: #{tpu_custom_call.1} parent=0 // loop_body
    %s20 = ssub.s32 %s15, 1
    %s21 = ssub.s32 %s15, 2
    %s22 = sadd.s32 %s15, 1
    %s23 = ssub.s32 %s15, %s22
    %p24 = scmp.eq.s32.totalorder %s23, 0
    %s26 = sadd.s32 %s25, 1
    %s27 = scalar_select %p24, %s25, %s26
    %p30 = pneg %p24
    %p31 = scmp.eq.s32.totalorder %s15, 1
    %p32 = por %p30, %p31
    %p33 = scmp.ne.s32.totalorder %s25, %s28
    %p34 = scmp.eq.s32.totalorder %s15, 0
    %p35 = por %p33, %p34
    %p36 = scmp.ne.s32.totalorder %s25, %s28
    %p37 = scmp.eq.s32.totalorder %s20, 1
    %p38 = por %p36, %p37
    %p39 = scmp.ne.s32.totalorder %s28, %s29
    %p40 = scmp.eq.s32.totalorder %s20, 0
    %p41 = por %p39, %p40
    %p42 = scmp.ne.s32.totalorder %s28, %s29
    %p43 = scmp.eq.s32.totalorder %s21, 1
    %p44 = por %p42, %p43
    %p46 = scmp.ne.s32.totalorder %s29, %s45
    %p47 = scmp.eq.s32.totalorder %s21, 0
    %p48 = por %p46, %p47
    %s50 = sadd.s32 %s49, 1
    %p53 = scmp.eq.s32.totalorder %s15, 1
    %p54 = scmp.ne.s32.totalorder %s49, %s51
    %p55 = scmp.eq.s32.totalorder %s15, 0
    %p56 = por %p54, %p55
    %p57 = scmp.ne.s32.totalorder %s49, %s51
    %p58 = scmp.eq.s32.totalorder %s20, 1
    %p59 = por %p57, %p58
    %p60 = scmp.ne.s32.totalorder %s51, %s52
    %p61 = scmp.eq.s32.totalorder %s20, 0
    %p62 = por %p60, %p61
    %p63 = scmp.ne.s32.totalorder %s51, %s52
    %p64 = scmp.eq.s32.totalorder %s21, 1
    %p65 = por %p63, %p64
    %p67 = scmp.ne.s32.totalorder %s52, %s66
    %p68 = scmp.eq.s32.totalorder %s21, 0
    %p69 = por %p67, %p68
    %s71 = sadd.s32 %s70, 1
    %p74 = scmp.eq.s32.totalorder %s15, 1
    %p75 = scmp.ne.s32.totalorder %s70, %s72
    %p76 = scmp.eq.s32.totalorder %s15, 0
    %p77 = por %p75, %p76
    %p78 = scmp.ne.s32.totalorder %s70, %s72
    %p79 = scmp.eq.s32.totalorder %s20, 1
    %p80 = por %p78, %p79
    %p81 = scmp.ne.s32.totalorder %s72, %s73
    %p82 = scmp.eq.s32.totalorder %s20, 0
    %p83 = por %p81, %p82
    %p84 = scmp.ne.s32.totalorder %s72, %s73
    %p85 = scmp.eq.s32.totalorder %s21, 1
    %p86 = por %p84, %p85
    %p88 = scmp.ne.s32.totalorder %s73, %s87
    %p89 = scmp.eq.s32.totalorder %s21, 0
    %p90 = por %p88, %p89
    %s92 = sadd.s32 %s91, 1
    %p95 = scmp.eq.s32.totalorder %s15, 1
    %p96 = scmp.ne.s32.totalorder %s91, %s93
    %p97 = scmp.eq.s32.totalorder %s15, 0
    %p98 = por %p96, %p97
    %p99 = scmp.ne.s32.totalorder %s91, %s93
    %p100 = scmp.eq.s32.totalorder %s20, 1
    %p101 = por %p99, %p100
    %p102 = scmp.ne.s32.totalorder %s93, %s94
    %p103 = scmp.eq.s32.totalorder %s20, 0
    %p104 = por %p102, %p103
    %p105 = scmp.ne.s32.totalorder %s93, %s94
    %p106 = scmp.eq.s32.totalorder %s21, 1
    %p107 = por %p105, %p106
    %p109 = scmp.ne.s32.totalorder %s94, %s108
    %p110 = scmp.eq.s32.totalorder %s21, 0
    %p111 = por %p109, %p110
    %s113 = sadd.s32 %s112, 1
    %p116 = scmp.eq.s32.totalorder %s15, 1
    %p117 = scmp.ne.s32.totalorder %s112, %s114
    %p118 = scmp.eq.s32.totalorder %s15, 0
    %p119 = por %p117, %p118
    %p120 = scmp.ne.s32.totalorder %s112, %s114
    %p121 = scmp.eq.s32.totalorder %s20, 1
    %p122 = por %p120, %p121
    %p123 = scmp.ne.s32.totalorder %s114, %s115
    %p124 = scmp.eq.s32.totalorder %s20, 0
    %p125 = por %p123, %p124
    %p126 = scmp.ne.s32.totalorder %s114, %s115
    %p127 = scmp.eq.s32.totalorder %s21, 1
    %p128 = por %p126, %p127
    %p130 = scmp.ne.s32.totalorder %s115, %s129
    %p131 = scmp.eq.s32.totalorder %s21, 0
    %p132 = por %p130, %p131
    %s134 = sadd.s32 %s133, 1
    %p137 = scmp.eq.s32.totalorder %s15, 1
    %p138 = scmp.ne.s32.totalorder %s133, %s135
    %p139 = scmp.eq.s32.totalorder %s15, 0
    %p140 = por %p138, %p139
    %p141 = scmp.ne.s32.totalorder %s133, %s135
    %p142 = scmp.eq.s32.totalorder %s20, 1
    %p143 = por %p141, %p142
    %p144 = scmp.ne.s32.totalorder %s135, %s136
    %p145 = scmp.eq.s32.totalorder %s20, 0
    %p146 = por %p144, %p145
    %p147 = scmp.ne.s32.totalorder %s135, %s136
    %p148 = scmp.eq.s32.totalorder %s21, 1
    %p149 = por %p147, %p148
    %p151 = scmp.ne.s32.totalorder %s136, %s150
    %p152 = scmp.eq.s32.totalorder %s21, 0
    %p153 = por %p151, %p152
    %s155 = sadd.s32 %s154, 1
    %p158 = scmp.eq.s32.totalorder %s15, 1
    %p159 = scmp.ne.s32.totalorder %s154, %s156
    %p160 = scmp.eq.s32.totalorder %s15, 0
    %p161 = por %p159, %p160
    %p162 = scmp.ne.s32.totalorder %s154, %s156
    %p163 = scmp.eq.s32.totalorder %s20, 1
    %p164 = por %p162, %p163
    %p165 = scmp.ne.s32.totalorder %s156, %s157
    %p166 = scmp.eq.s32.totalorder %s20, 0
    %p167 = por %p165, %p166
    %p168 = scmp.ne.s32.totalorder %s156, %s157
    %p169 = scmp.eq.s32.totalorder %s21, 1
    %p170 = por %p168, %p169
    %p172 = scmp.ne.s32.totalorder %s157, %s171
    %p173 = scmp.eq.s32.totalorder %s21, 0
    %p174 = por %p172, %p173
    %s175 = ssub.s32 %s15, %s22
    %p176 = scmp.eq.s32.totalorder %s175, 0
    %s178 = sadd.s32 %s177, 1
    %s179 = scalar_select %p176, %s177, %s178
    %p182 = pneg %p176
    %p183 = scmp.eq.s32.totalorder %s15, 1
    %p184 = por %p182, %p183
    %p185 = scmp.ne.s32.totalorder %s177, %s180
    %p186 = scmp.eq.s32.totalorder %s15, 0
    %p187 = por %p185, %p186
    %p188 = scmp.ne.s32.totalorder %s177, %s180
    %p189 = scmp.eq.s32.totalorder %s20, 1
    %p190 = por %p188, %p189
    %p191 = scmp.ne.s32.totalorder %s180, %s181
    %p192 = scmp.eq.s32.totalorder %s20, 0
    %p193 = por %p191, %p192
    %p194 = scmp.ne.s32.totalorder %s180, %s181
    %p195 = scmp.eq.s32.totalorder %s21, 1
    %p196 = por %p194, %p195
    %p198 = scmp.ne.s32.totalorder %s181, %s197
    %p199 = scmp.eq.s32.totalorder %s21, 0
    %p200 = por %p198, %p199
    %p201 = scmp.le.s32.totalorder 1, %s15
    %p202 = scmp.lt.s32.totalorder %s15, 3
    %p203 = pnand %p201, %p202
    %p204 = pneg %p203
    // Predicated region
    $region9: #{tpu_custom_call.1} parent=5 // pred_check
      _
    $region10: #{tpu_custom_call.1} parent=5 // pred_check_branch
      %206 = sbr.rel (%p203) target = $region12
    $region11: #{tpu_custom_call.1} parent=5 // pred_region
      %s207 = ssub.s32 %s15, 1
      // Predicated region
      $region13: #{tpu_custom_call.1} parent=11 // pred_check
        %p208 = pneg %p62
      $region14: #{tpu_custom_call.1} parent=11 // pred_check_branch
        %210 = sbr.rel (%p208) target = $region16
      $region15: #{tpu_custom_call.1} parent=11 // pred_region
        _
      $region16: #{tpu_custom_call.1} parent=11 // pred_fallthru
        _
      // Predicated region
      $region17: #{tpu_custom_call.1} parent=11 // pred_check
        %p211 = pneg %p83
      $region18: #{tpu_custom_call.1} parent=11 // pred_check_branch
        %213 = sbr.rel (%p211) target = $region20
      $region19: #{tpu_custom_call.1} parent=11 // pred_region
        _
      $region20: #{tpu_custom_call.1} parent=11 // pred_fallthru
        _
      // Predicated region
      $region21: #{tpu_custom_call.1} parent=11 // pred_check
        %p214 = pneg %p104
      $region22: #{tpu_custom_call.1} parent=11 // pred_check_branch
        %216 = sbr.rel (%p214) target = $region24
      $region23: #{tpu_custom_call.1} parent=11 // pred_region
        _
      $region24: #{tpu_custom_call.1} parent=11 // pred_fallthru
        _
      // Predicated region
      $region25: #{tpu_custom_call.1} parent=11 // pred_check
        %p217 = pneg %p125
      $region26: #{tpu_custom_call.1} parent=11 // pred_check_branch
        %219 = sbr.rel (%p217) target = $region28
      $region27: #{tpu_custom_call.1} parent=11 // pred_region
        _
      $region28: #{tpu_custom_call.1} parent=11 // pred_fallthru
        _
      // Predicated region
      $region29: #{tpu_custom_call.1} parent=11 // pred_check
        %p220 = pneg %p146
      $region30: #{tpu_custom_call.1} parent=11 // pred_check_branch
        %222 = sbr.rel (%p220) target = $region32
      $region31: #{tpu_custom_call.1} parent=11 // pred_region
        _
      $region32: #{tpu_custom_call.1} parent=11 // pred_fallthru
        _
      // Predicated region
      $region33: #{tpu_custom_call.1} parent=11 // pred_check
        %p223 = pneg %p167
      $region34: #{tpu_custom_call.1} parent=11 // pred_check_branch
        %225 = sbr.rel (%p223) target = $region36
      $region35: #{tpu_custom_call.1} parent=11 // pred_region
        _
      $region36: #{tpu_custom_call.1} parent=11 // pred_fallthru
        _
    $region12: #{tpu_custom_call.1} parent=5 // pred_fallthru
      _
    %p226 = scmp.lt.s32.totalorder %s15, 2
    // Predicated region
    $region37: #{tpu_custom_call.1} parent=5 // pred_check
      %p227 = pneg %p226
    $region38: #{tpu_custom_call.1} parent=5 // pred_check_branch
      %229 = sbr.rel (%p227) target = $region40
    $region39: #{tpu_custom_call.1} parent=5 // pred_region
      // Predicated region
      $region41: #{tpu_custom_call.1} parent=39 // pred_check
        %p230 = pneg %p35
      $region42: #{tpu_custom_call.1} parent=39 // pred_check_branch
        %232 = sbr.rel (%p230) target = $region44
      $region43: #{tpu_custom_call.1} parent=39 // pred_region
        %s233 = smul.u32 64, %s15
        %p234 = scmp.lt.s32.totalorder %s233, 127
        %s235 = scalar_select %p234, %s233, 127
        %s236 = smul.addr %s235, 8
        %s237 = scalar_lea.vmem %s0, %s236
        %s238 = smul.u32 64, %s15
      $region44: #{tpu_custom_call.1} parent=39 // pred_fallthru
        _
    $region40: #{tpu_custom_call.1} parent=5 // pred_fallthru
      _
    %p239 = scmp.le.s32.totalorder 1, %s15
    %p240 = scmp.lt.s32.totalorder %s15, 3
    %p241 = pnand %p239, %p240
    %p242 = pneg %p241
    // Predicated region
    $region45: #{tpu_custom_call.1} parent=5 // pred_check
      _
    $region46: #{tpu_custom_call.1} parent=5 // pred_check_branch
      %244 = sbr.rel (%p241) target = $region48
    $region47: #{tpu_custom_call.1} parent=5 // pred_region
      %s245 = ssub.s32 %s15, 1
      %s246 = smul.u32 64, %s20
      %p247 = scmp.lt.s32.totalorder %s246, 127
      %s248 = scalar_select %p247, %s246, 127
      %s249 = smul.addr %s248, 8
      %s250 = scalar_lea.vmem %s0, %s249
      %p251 = pneg %p41
      %p252 = pneg %p38
      %p253 = pneg %p62
      %p254 = pneg %p59
      %p255 = pneg %p83
      %p256 = pneg %p80
      %p257 = pneg %p104
      %p258 = pneg %p101
      %p259 = pneg %p125
      %p260 = pneg %p122
      %p261 = pneg %p146
      %p262 = pneg %p143
      %p263 = pneg %p167
      %p264 = pneg %p164
      %p265 = pneg %p193
      %p266 = pneg %p190
      %s267 = smul.u32 64, %s20
      %p268 = scmp.lt.s32.totalorder %s267, 127
      %s269 = scalar_select %p268, %s267, 127
      %s270 = smul.addr %s269, 8
      %s271 = scalar_lea.vmem %s7, %s270
      %s272 = smul.u32 64, %s20
      %p273 = scmp.lt.s32.totalorder %s272, 127
      %s274 = scalar_select %p273, %s272, 127
      %s275 = smul.addr %s274, 8
      %s276 = scalar_lea.vmem %s0, %s275
      %s277 = smul.u32 64, %s20
      %s278 = smul.u32 64, %s20
      %p279 = scmp.lt.s32.totalorder %s278, 127
      %s280 = scalar_select %p279, %s278, 127
      %s281 = smul.addr %s280, 8
      %s282 = scalar_lea.vmem %s7, %s281
      %s283 = smul.u32 64, %s20
      %v285 = vld [vmem:[%s276] sm:$0xff]
      %v286 = vld [vmem:[%s276 + $0x8] sm:$0xff]
      %v287 = vld [vmem:[%s276 + $0x10] sm:$0xff]
      %v288 = vld [vmem:[%s276 + $0x18] sm:$0xff]
      %v289 = vld [vmem:[%s276 + $0x20] sm:$0xff]
      %v290 = vld [vmem:[%s276 + $0x28] sm:$0xff]
      %v291 = vld [vmem:[%s276 + $0x30] sm:$0xff]
      %v292 = vld [vmem:[%s276 + $0x38] sm:$0xff]
      %v293 = vld [vmem:[%s276 + $0x40] sm:$0xff]
      %v294 = vld [vmem:[%s276 + $0x48] sm:$0xff]
      %v295 = vld [vmem:[%s276 + $0x50] sm:$0xff]
      %v296 = vld [vmem:[%s276 + $0x58] sm:$0xff]
      %v297 = vld [vmem:[%s276 + $0x60] sm:$0xff]
      %v298 = vld [vmem:[%s276 + $0x68] sm:$0xff]
      %v299 = vld [vmem:[%s276 + $0x70] sm:$0xff]
      %v300 = vld [vmem:[%s276 + $0x78] sm:$0xff]
      %v301 = vld [vmem:[%s276 + $0x80] sm:$0xff]
      %v302 = vld [vmem:[%s276 + $0x88] sm:$0xff]
      %v303 = vld [vmem:[%s276 + $0x90] sm:$0xff]
      %v304 = vld [vmem:[%s276 + $0x98] sm:$0xff]
      %v305 = vld [vmem:[%s276 + $0xa0] sm:$0xff]
      %v306 = vld [vmem:[%s276 + $0xa8] sm:$0xff]
      %v307 = vld [vmem:[%s276 + $0xb0] sm:$0xff]
      %v308 = vld [vmem:[%s276 + $0xb8] sm:$0xff]
      %v309 = vld [vmem:[%s276 + $0xc0] sm:$0xff]
      %v310 = vld [vmem:[%s276 + $0xc8] sm:$0xff]
      %v311 = vld [vmem:[%s276 + $0xd0] sm:$0xff]
      %v312 = vld [vmem:[%s276 + $0xd8] sm:$0xff]
      %v313 = vld [vmem:[%s276 + $0xe0] sm:$0xff]
      %v314 = vld [vmem:[%s276 + $0xe8] sm:$0xff]
      %v315 = vld [vmem:[%s276 + $0xf0] sm:$0xff]
      %v316 = vld [vmem:[%s276 + $0xf8] sm:$0xff]
      %v317 = vld [vmem:[%s276 + $0x100] sm:$0xff]
      %v318 = vld [vmem:[%s276 + $0x108] sm:$0xff]
      %v319 = vld [vmem:[%s276 + $0x110] sm:$0xff]
      %v320 = vld [vmem:[%s276 + $0x118] sm:$0xff]
      %v321 = vld [vmem:[%s276 + $0x120] sm:$0xff]
      %v322 = vld [vmem:[%s276 + $0x128] sm:$0xff]
      %v323 = vld [vmem:[%s276 + $0x130] sm:$0xff]
      %v324 = vld [vmem:[%s276 + $0x138] sm:$0xff]
      %v325 = vld [vmem:[%s276 + $0x140] sm:$0xff]
      %v326 = vld [vmem:[%s276 + $0x148] sm:$0xff]
      %v327 = vld [vmem:[%s276 + $0x150] sm:$0xff]
      %v328 = vld [vmem:[%s276 + $0x158] sm:$0xff]
      %v329 = vld [vmem:[%s276 + $0x160] sm:$0xff]
      %v330 = vld [vmem:[%s276 + $0x168] sm:$0xff]
      %v331 = vld [vmem:[%s276 + $0x170] sm:$0xff]
      %v332 = vld [vmem:[%s276 + $0x178] sm:$0xff]
      %v333 = vld [vmem:[%s276 + $0x180] sm:$0xff]
      %v334 = vld [vmem:[%s276 + $0x188] sm:$0xff]
      %v335 = vld [vmem:[%s276 + $0x190] sm:$0xff]
      %v336 = vld [vmem:[%s276 + $0x198] sm:$0xff]
      %v337 = vld [vmem:[%s276 + $0x1a0] sm:$0xff]
      %v338 = vld [vmem:[%s276 + $0x1a8] sm:$0xff]
      %v339 = vld [vmem:[%s276 + $0x1b0] sm:$0xff]
      %v340 = vld [vmem:[%s276 + $0x1b8] sm:$0xff]
      %v341 = vld [vmem:[%s276 + $0x1c0] sm:$0xff]
      %v342 = vld [vmem:[%s276 + $0x1c8] sm:$0xff]
      %v343 = vld [vmem:[%s276 + $0x1d0] sm:$0xff]
      %v344 = vld [vmem:[%s276 + $0x1d8] sm:$0xff]
      %v345 = vld [vmem:[%s276 + $0x1e0] sm:$0xff]
      %v346 = vld [vmem:[%s276 + $0x1e8] sm:$0xff]
      %v347 = vld [vmem:[%s276 + $0x1f0] sm:$0xff]
      %v348 = vld [vmem:[%s276 + $0x1f8] sm:$0xff]
      %v349 = vpack.c.bf16 %v286, %v285
      %v350 = vpack.c.bf16 %v288, %v287
      %v351 = vpack.c.bf16 %v290, %v289
      %v352 = vpack.c.bf16 %v292, %v291
      %v353 = vpack.c.bf16 %v294, %v293
      %v354 = vpack.c.bf16 %v296, %v295
      %v355 = vpack.c.bf16 %v298, %v297
      %v356 = vpack.c.bf16 %v300, %v299
      %v357 = vpack.c.bf16 %v302, %v301
      %v358 = vpack.c.bf16 %v304, %v303
      %v359 = vpack.c.bf16 %v306, %v305
      %v360 = vpack.c.bf16 %v308, %v307
      %v361 = vpack.c.bf16 %v310, %v309
      %v362 = vpack.c.bf16 %v312, %v311
      %v363 = vpack.c.bf16 %v314, %v313
      %v364 = vpack.c.bf16 %v316, %v315
      %v365 = vpack.c.bf16 %v318, %v317
      %v366 = vpack.c.bf16 %v320, %v319
      %v367 = vpack.c.bf16 %v322, %v321
      %v368 = vpack.c.bf16 %v324, %v323
      %v369 = vpack.c.bf16 %v326, %v325
      %v370 = vpack.c.bf16 %v328, %v327
      %v371 = vpack.c.bf16 %v330, %v329
      %v372 = vpack.c.bf16 %v332, %v331
      %v373 = vpack.c.bf16 %v334, %v333
      %v374 = vpack.c.bf16 %v336, %v335
      %v375 = vpack.c.bf16 %v338, %v337
      %v376 = vpack.c.bf16 %v340, %v339
      %v377 = vpack.c.bf16 %v342, %v341
      %v378 = vpack.c.bf16 %v344, %v343
      %v379 = vpack.c.bf16 %v346, %v345
      %v380 = vpack.c.bf16 %v348, %v347
      %v381 = vld [vmem:[%s1] sm:$0xff]
      %v382 = vld [vmem:[%s1 + $0x8] sm:$0xff]
      %v383 = vld [vmem:[%s1 + $0x10] sm:$0xff]
      %v384 = vld [vmem:[%s2] sm:$0x3]
      %v386 = vlaneseq
      %v387 = vshrl.u32 %v386, 7
      %v388 = vsub.s32 0, %v387
      %v389 = vrot.slane %v384, %v388
      %v390 = vlaneseq
      %v391 = vshrl.u32 %v390, 7
      %v392 = vsub.s32 1, %v391
      %v393 = vrot.slane %v384, %v392
      %v399 = vunpack.c.l.b16 %v381
      %v400 = vunpack.c.h.b16 %v381
      %v401 = vunpack.c.l.b16 %v382
      %v402 = vunpack.c.h.b16 %v382
      %v403 = vunpack.c.l.b16 %v383
      %v404 = vunpack.c.h.b16 %v383
      %v405 = vpack.c.b16 %v401, %v399
      %v406 = vpack.c.b16 %v402, %v400
      %v407 = vpack.c.b16 %v403, %v403
      %v408 = vpack.c.b16 %v404, %v404
      %vm411 = vcmask 195584
      %v413 = vsel %vm411, %v349, 0
      %v416 = vsel %vm411, %v350, 0
      %v419 = vsel %vm411, %v351, 0
      %v422 = vsel %vm411, %v352, 0
      %v425 = vsel %vm411, %v353, 0
      %v428 = vsel %vm411, %v354, 0
      %v431 = vsel %vm411, %v355, 0
      %v434 = vsel %vm411, %v356, 0
      %v437 = vsel %vm411, %v357, 0
      %v440 = vsel %vm411, %v358, 0
      %v443 = vsel %vm411, %v359, 0
      %v446 = vsel %vm411, %v360, 0
      %v449 = vsel %vm411, %v361, 0
      %v452 = vsel %vm411, %v362, 0
      %v455 = vsel %vm411, %v363, 0
      %v458 = vsel %vm411, %v364, 0
      %v461 = vsel %vm411, %v365, 0
      %v464 = vsel %vm411, %v366, 0
      %v467 = vsel %vm411, %v367, 0
      %v470 = vsel %vm411, %v368, 0
      %v473 = vsel %vm411, %v369, 0
      %v476 = vsel %vm411, %v370, 0
      %v479 = vsel %vm411, %v371, 0
      %v482 = vsel %vm411, %v372, 0
      %v485 = vsel %vm411, %v373, 0
      %v488 = vsel %vm411, %v374, 0
      %v491 = vsel %vm411, %v375, 0
      %v494 = vsel %vm411, %v376, 0
      %v497 = vsel %vm411, %v377, 0
      %v500 = vsel %vm411, %v378, 0
      %v503 = vsel %vm411, %v379, 0
      %v506 = vsel %vm411, %v380, 0
      %vm508 = vcmask 1043456
      %v510 = vsel %vm508, %v407, 0
      %v513 = vsel %vm508, %v408, 0
      %515 = vmatprep.subr.bf16.mxu0 %v406
      %516 = vmatpush1.bf16.msra.mxu0 %v405
      %517 = vmatprep.subr.bf16.mxu0 %v513
      %518 = vmatpush1.bf16.msra.mxu0 %v510
      %519 = vmatprep.subr.bf16.mxu0 0
      %520 = vmatpush1.bf16.msra.mxu0 0
      %521 = vmatprep.subr.bf16.mxu0 0
      %522 = vmatpush1.bf16.msra.mxu0 0
      %523 = vmatprep.subr.bf16.mxu0 0
      %524 = vmatpush1.bf16.msra.mxu0 0
      %525 = vmatprep.subr.bf16.mxu0 0
      %526 = vmatpush1.bf16.msra.mxu0 0
      %527 = vmatprep.subr.bf16.mxu0 0
      %528 = vmatpush1.bf16.msra.mxu0 0
      %529 = vmatprep.subr.bf16.mxu0 0
      %530 = vmatpush1.bf16.msra.mxu0 0
      %531 = vmatprep.subr.bf16.mxu0 0
      %532 = vmatpush1.bf16.msra.mxu0 0
      %533 = vmatprep.subr.bf16.mxu0 0
      %534 = vmatpush1.bf16.msra.mxu0 0
      %535 = vmatprep.subr.bf16.mxu0 0
      %536 = vmatpush1.bf16.msra.mxu0 0
      %537 = vmatprep.subr.bf16.mxu0 0
      %538 = vmatpush1.bf16.msra.mxu0 0
      %539 = vmatprep.subr.bf16.mxu0 0
      %540 = vmatpush1.bf16.msra.mxu0 0
      %541 = vmatprep.subr.bf16.mxu0 0
      %542 = vmatpush1.bf16.msra.mxu0 0
      %543 = vmatprep.subr.bf16.mxu0 0
      %544 = vmatpush1.bf16.msra.mxu0 0
      %545 = vmatprep.subr.bf16.mxu0 0
      %546 = vmatpush1.bf16.msra.mxu0 0
      %547 = vmatprep.mubr.bf16.mxu0 0
      %548 = vmatmul.mubr.bf16.gmra.mrb[0].mxu0 %v413
      %v549 = vpop.f32.mrb[0].mxu0
      %v550 = vadd.f32 %v389, %v549
      %v551 = vpop.f32.mrb[0].mxu0
      %v552 = vadd.f32 %v393, %v551
      %v553 = vpop.f32.mrb[0].mxu0
      %v554 = vadd.f32 %v389, %v553
      %v555 = vpop.f32.mrb[0].mxu0
      %v556 = vadd.f32 %v393, %v555
      %557 = vmatprep.mubr.bf16.mxu0 0
      %558 = vmatmul.mubr.bf16.gmra.mrb[0].mxu0 %v416
      %v559 = vpop.f32.mrb[0].mxu0
      %v560 = vadd.f32 %v389, %v559
      %v561 = vpop.f32.mrb[0].mxu0
      %v562 = vadd.f32 %v393, %v561
      %v563 = vpop.f32.mrb[0].mxu0
      %v564 = vadd.f32 %v389, %v563
      %v565 = vpop.f32.mrb[0].mxu0
      %v566 = vadd.f32 %v393, %v565
      %567 = vmatprep.mubr.bf16.mxu0 0
      %568 = vmatmul.mubr.bf16.gmra.mrb[0].mxu0 %v419
      %v569 = vpop.f32.mrb[0].mxu0
      %v570 = vadd.f32 %v389, %v569
      %v571 = vpop.f32.mrb[0].mxu0
      %v572 = vadd.f32 %v393, %v571
      %v573 = vpop.f32.mrb[0].mxu0
      %v574 = vadd.f32 %v389, %v573
      %v575 = vpop.f32.mrb[0].mxu0
      %v576 = vadd.f32 %v393, %v575
      %577 = vmatprep.mubr.bf16.mxu0 0
      %578 = vmatmul.mubr.bf16.gmra.mrb[0].mxu0 %v422
      %v579 = vpop.f32.mrb[0].mxu0
      %v580 = vadd.f32 %v389, %v579
      %v581 = vpop.f32.mrb[0].mxu0
      %v582 = vadd.f32 %v393, %v581
      %v583 = vpop.f32.mrb[0].mxu0
      %v584 = vadd.f32 %v389, %v583
      %v585 = vpop.f32.mrb[0].mxu0
      %v586 = vadd.f32 %v393, %v585
      %587 = vmatprep.mubr.bf16.mxu0 0
      %588 = vmatmul.mubr.bf16.gmra.mrb[0].mxu0 %v425
      %v589 = vpop.f32.mrb[0].mxu0
      %v590 = vadd.f32 %v389, %v589
      %v591 = vpop.f32.mrb[0].mxu0
      %v592 = vadd.f32 %v393, %v591
      %v593 = vpop.f32.mrb[0].mxu0
      %v594 = vadd.f32 %v389, %v593
      %v595 = vpop.f32.mrb[0].mxu0
      %v596 = vadd.f32 %v393, %v595
      %597 = vmatprep.mubr.bf16.mxu0 0
      %598 = vmatmul.mubr.bf16.gmra.mrb[0].mxu0 %v428
      %v599 = vpop.f32.mrb[0].mxu0
      %v600 = vadd.f32 %v389, %v599
      %v601 = vpop.f32.mrb[0].mxu0
      %v602 = vadd.f32 %v393, %v601
      %v603 = vpop.f32.mrb[0].mxu0
      %v604 = vadd.f32 %v389, %v603
      %v605 = vpop.f32.mrb[0].mxu0
      %v606 = vadd.f32 %v393, %v605
      %607 = vmatprep.mubr.bf16.mxu0 0
      %608 = vmatmul.mubr.bf16.gmra.mrb[0].mxu0 %v431
      %v609 = vpop.f32.mrb[0].mxu0
      %v610 = vadd.f32 %v389, %v609
      %v611 = vpop.f32.mrb[0].mxu0
      %v612 = vadd.f32 %v393, %v611
      %v613 = vpop.f32.mrb[0].mxu0
      %v614 = vadd.f32 %v389, %v613
      %v615 = vpop.f32.mrb[0].mxu0
      %v616 = vadd.f32 %v393, %v615
      %617 = vmatprep.mubr.bf16.mxu0 0
      %618 = vmatmul.mubr.bf16.gmra.mrb[0].mxu0 %v434
      %v619 = vpop.f32.mrb[0].mxu0
      %v620 = vadd.f32 %v389, %v619
      %v621 = vpop.f32.mrb[0].mxu0
      %v622 = vadd.f32 %v393, %v621
      %v623 = vpop.f32.mrb[0].mxu0
      %v624 = vadd.f32 %v389, %v623
      %v625 = vpop.f32.mrb[0].mxu0
      %v626 = vadd.f32 %v393, %v625
      %627 = vmatprep.mubr.bf16.mxu0 0
      %628 = vmatmul.mubr.bf16.gmra.mrb[0].mxu0 %v437
      %v629 = vpop.f32.mrb[0].mxu0
      %v630 = vadd.f32 %v389, %v629
      %v631 = vpop.f32.mrb[0].mxu0
      %v632 = vadd.f32 %v393, %v631
      %v633 = vpop.f32.mrb[0].mxu0
      %v634 = vadd.f32 %v389, %v633
      %v635 = vpop.f32.mrb[0].mxu0
      %v636 = vadd.f32 %v393, %v635
      %637 = vmatprep.mubr.bf16.mxu0 0
      %638 = vmatmul.mubr.bf16.gmra.mrb[0].mxu0 %v440
      %v639 = vpop.f32.mrb[0].mxu0
      %v640 = vadd.f32 %v389, %v639
      %v641 = vpop.f32.mrb[0].mxu0
      %v642 = vadd.f32 %v393, %v641
      %v643 = vpop.f32.mrb[0].mxu0
      %v644 = vadd.f32 %v389, %v643
      %v645 = vpop.f32.mrb[0].mxu0
      %v646 = vadd.f32 %v393, %v645
      %647 = vmatprep.mubr.bf16.mxu0 0
      %648 = vmatmul.mubr.bf16.gmra.mrb[0].mxu0 %v443
      %v649 = vpop.f32.mrb[0].mxu0
      %v650 = vadd.f32 %v389, %v649
      %v651 = vpop.f32.mrb[0].mxu0
      %v652 = vadd.f32 %v393, %v651
      %v653 = vpop.f32.mrb[0].mxu0
      %v654 = vadd.f32 %v389, %v653
      %v655 = vpop.f32.mrb[0].mxu0
      %v656 = vadd.f32 %v393, %v655
      %657 = vmatprep.mubr.bf16.mxu0 0
      %658 = vmatmul.mubr.bf16.gmra.mrb[0].mxu0 %v446
      %v659 = vpop.f32.mrb[0].mxu0
      %v660 = vadd.f32 %v389, %v659
      %v661 = vpop.f32.mrb[0].mxu0
      %v662 = vadd.f32 %v393, %v661
      %v663 = vpop.f32.mrb[0].mxu0
      %v664 = vadd.f32 %v389, %v663
      %v665 = vpop.f32.mrb[0].mxu0
      %v666 = vadd.f32 %v393, %v665
      %667 = vmatprep.mubr.bf16.mxu0 0
      %668 = vmatmul.mubr.bf16.gmra.mrb[0].mxu0 %v449
      %v669 = vpop.f32.mrb[0].mxu0
      %v670 = vadd.f32 %v389, %v669
      %v671 = vpop.f32.mrb[0].mxu0
      %v672 = vadd.f32 %v393, %v671
      %v673 = vpop.f32.mrb[0].mxu0
      %v674 = vadd.f32 %v389, %v673
      %v675 = vpop.f32.mrb[0].mxu0
      %v676 = vadd.f32 %v393, %v675
      %677 = vmatprep.mubr.bf16.mxu0 0
      %678 = vmatmul.mubr.bf16.gmra.mrb[0].mxu0 %v452
      %v679 = vpop.f32.mrb[0].mxu0
      %v680 = vadd.f32 %v389, %v679
      %v681 = vpop.f32.mrb[0].mxu0
      %v682 = vadd.f32 %v393, %v681
      %v683 = vpop.f32.mrb[0].mxu0
      %v684 = vadd.f32 %v389, %v683
      %v685 = vpop.f32.mrb[0].mxu0
      %v686 = vadd.f32 %v393, %v685
      %687 = vmatprep.mubr.bf16.mxu0 0
      %688 = vmatmul.mubr.bf16.gmra.mrb[0].mxu0 %v455
      %v689 = vpop.f32.mrb[0].mxu0
      %v690 = vadd.f32 %v389, %v689
      %v691 = vpop.f32.mrb[0].mxu0
      %v692 = vadd.f32 %v393, %v691
      %v693 = vpop.f32.mrb[0].mxu0
      %v694 = vadd.f32 %v389, %v693
      %v695 = vpop.f32.mrb[0].mxu0
      %v696 = vadd.f32 %v393, %v695
      %697 = vmatprep.mubr.bf16.mxu0 0
      %698 = vmatmul.mubr.bf16.gmra.mrb[0].mxu0 %v458
      %v699 = vpop.f32.mrb[0].mxu0
      %v700 = vadd.f32 %v389, %v699
      %v701 = vpop.f32.mrb[0].mxu0
      %v702 = vadd.f32 %v393, %v701
      %v703 = vpop.f32.mrb[0].mxu0
      %v704 = vadd.f32 %v389, %v703
      %v705 = vpop.f32.mrb[0].mxu0
      %v706 = vadd.f32 %v393, %v705
      %707 = vmatprep.mubr.bf16.mxu0 0
      %708 = vmatmul.mubr.bf16.gmra.mrb[0].mxu0 %v461
      %v709 = vpop.f32.mrb[0].mxu0
      %v710 = vadd.f32 %v389, %v709
      %v711 = vpop.f32.mrb[0].mxu0
      %v712 = vadd.f32 %v393, %v711
      %v713 = vpop.f32.mrb[0].mxu0
      %v714 = vadd.f32 %v389, %v713
      %v715 = vpop.f32.mrb[0].mxu0
      %v716 = vadd.f32 %v393, %v715
      %717 = vmatprep.mubr.bf16.mxu0 0
      %718 = vmatmul.mubr.bf16.gmra.mrb[0].mxu0 %v464
      %v719 = vpop.f32.mrb[0].mxu0
      %v720 = vadd.f32 %v389, %v719
      %v721 = vpop.f32.mrb[0].mxu0
      %v722 = vadd.f32 %v393, %v721
      %v723 = vpop.f32.mrb[0].mxu0
      %v724 = vadd.f32 %v389, %v723
      %v725 = vpop.f32.mrb[0].mxu0
      %v726 = vadd.f32 %v393, %v725
      %727 = vmatprep.mubr.bf16.mxu0 0
      %728 = vmatmul.mubr.bf16.gmra.mrb[0].mxu0 %v467
      %v729 = vpop.f32.mrb[0].mxu0
      %v730 = vadd.f32 %v389, %v729
      %v731 = vpop.f32.mrb[0].mxu0
      %v732 = vadd.f32 %v393, %v731
      %v733 = vpop.f32.mrb[0].mxu0
      %v734 = vadd.f32 %v389, %v733
      %v735 = vpop.f32.mrb[0].mxu0
      %v736 = vadd.f32 %v393, %v735
      %737 = vmatprep.mubr.bf16.mxu0 0
      %738 = vmatmul.mubr.bf16.gmra.mrb[0].mxu0 %v470
      %v739 = vpop.f32.mrb[0].mxu0
      %v740 = vadd.f32 %v389, %v739
      %v741 = vpop.f32.mrb[0].mxu0
      %v742 = vadd.f32 %v393, %v741
      %v743 = vpop.f32.mrb[0].mxu0
      %v744 = vadd.f32 %v389, %v743
      %v745 = vpop.f32.mrb[0].mxu0
      %v746 = vadd.f32 %v393, %v745
      %747 = vmatprep.mubr.bf16.mxu0 0
      %748 = vmatmul.mubr.bf16.gmra.mrb[0].mxu0 %v473
      %v749 = vpop.f32.mrb[0].mxu0
      %v750 = vadd.f32 %v389, %v749
      %v751 = vpop.f32.mrb[0].mxu0
      %v752 = vadd.f32 %v393, %v751
      %v753 = vpop.f32.mrb[0].mxu0
      %v754 = vadd.f32 %v389, %v753
      %v755 = vpop.f32.mrb[0].mxu0
      %v756 = vadd.f32 %v393, %v755
      %757 = vmatprep.mubr.bf16.mxu0 0
      %758 = vmatmul.mubr.bf16.gmra.mrb[0].mxu0 %v476
      %v759 = vpop.f32.mrb[0].mxu0
      %v760 = vadd.f32 %v389, %v759
      %v761 = vpop.f32.mrb[0].mxu0
      %v762 = vadd.f32 %v393, %v761
      %v763 = vpop.f32.mrb[0].mxu0
      %v764 = vadd.f32 %v389, %v763
      %v765 = vpop.f32.mrb[0].mxu0
      %v766 = vadd.f32 %v393, %v765
      %767 = vmatprep.mubr.bf16.mxu0 0
      %768 = vmatmul.mubr.bf16.gmra.mrb[0].mxu0 %v479
      %v769 = vpop.f32.mrb[0].mxu0
      %v770 = vadd.f32 %v389, %v769
      %v771 = vpop.f32.mrb[0].mxu0
      %v772 = vadd.f32 %v393, %v771
      %v773 = vpop.f32.mrb[0].mxu0
      %v774 = vadd.f32 %v389, %v773
      %v775 = vpop.f32.mrb[0].mxu0
      %v776 = vadd.f32 %v393, %v775
      %777 = vmatprep.mubr.bf16.mxu0 0
      %778 = vmatmul.mubr.bf16.gmra.mrb[0].mxu0 %v482
      %v779 = vpop.f32.mrb[0].mxu0
      %v780 = vadd.f32 %v389, %v779
      %v781 = vpop.f32.mrb[0].mxu0
      %v782 = vadd.f32 %v393, %v781
      %v783 = vpop.f32.mrb[0].mxu0
      %v784 = vadd.f32 %v389, %v783
      %v785 = vpop.f32.mrb[0].mxu0
      %v786 = vadd.f32 %v393, %v785
      %787 = vmatprep.mubr.bf16.mxu0 0
      %788 = vmatmul.mubr.bf16.gmra.mrb[0].mxu0 %v485
      %v789 = vpop.f32.mrb[0].mxu0
      %v790 = vadd.f32 %v389, %v789
      %v791 = vpop.f32.mrb[0].mxu0
      %v792 = vadd.f32 %v393, %v791
      %v793 = vpop.f32.mrb[0].mxu0
      %v794 = vadd.f32 %v389, %v793
      %v795 = vpop.f32.mrb[0].mxu0
      %v796 = vadd.f32 %v393, %v795
      %797 = vmatprep.mubr.bf16.mxu0 0
      %798 = vmatmul.mubr.bf16.gmra.mrb[0].mxu0 %v488
      %v799 = vpop.f32.mrb[0].mxu0
      %v800 = vadd.f32 %v389, %v799
      %v801 = vpop.f32.mrb[0].mxu0
      %v802 = vadd.f32 %v393, %v801
      %v803 = vpop.f32.mrb[0].mxu0
      %v804 = vadd.f32 %v389, %v803
      %v805 = vpop.f32.mrb[0].mxu0
      %v806 = vadd.f32 %v393, %v805
      %807 = vmatprep.mubr.bf16.mxu0 0
      %808 = vmatmul.mubr.bf16.gmra.mrb[0].mxu0 %v491
      %v809 = vpop.f32.mrb[0].mxu0
      %v810 = vadd.f32 %v389, %v809
      %v811 = vpop.f32.mrb[0].mxu0
      %v812 = vadd.f32 %v393, %v811
      %v813 = vpop.f32.mrb[0].mxu0
      %v814 = vadd.f32 %v389, %v813
      %v815 = vpop.f32.mrb[0].mxu0
      %v816 = vadd.f32 %v393, %v815
      %817 = vmatprep.mubr.bf16.mxu0 0
      %818 = vmatmul.mubr.bf16.gmra.mrb[0].mxu0 %v494
      %v819 = vpop.f32.mrb[0].mxu0
      %v820 = vadd.f32 %v389, %v819
      %v821 = vpop.f32.mrb[0].mxu0
      %v822 = vadd.f32 %v393, %v821
      %v823 = vpop.f32.mrb[0].mxu0
      %v824 = vadd.f32 %v389, %v823
      %v825 = vpop.f32.mrb[0].mxu0
      %v826 = vadd.f32 %v393, %v825
      %827 = vmatprep.mubr.bf16.mxu0 0
      %828 = vmatmul.mubr.bf16.gmra.mrb[0].mxu0 %v497
      %v829 = vpop.f32.mrb[0].mxu0
      %v830 = vadd.f32 %v389, %v829
      %v831 = vpop.f32.mrb[0].mxu0
      %v832 = vadd.f32 %v393, %v831
      %v833 = vpop.f32.mrb[0].mxu0
      %v834 = vadd.f32 %v389, %v833
      %v835 = vpop.f32.mrb[0].mxu0
      %v836 = vadd.f32 %v393, %v835
      %837 = vmatprep.mubr.bf16.mxu0 0
      %838 = vmatmul.mubr.bf16.gmra.mrb[0].mxu0 %v500
      %v839 = vpop.f32.mrb[0].mxu0
      %v840 = vadd.f32 %v389, %v839
      %v841 = vpop.f32.mrb[0].mxu0
      %v842 = vadd.f32 %v393, %v841
      %v843 = vpop.f32.mrb[0].mxu0
      %v844 = vadd.f32 %v389, %v843
      %v845 = vpop.f32.mrb[0].mxu0
      %v846 = vadd.f32 %v393, %v845
      %847 = vmatprep.mubr.bf16.mxu0 0
      %848 = vmatmul.mubr.bf16.gmra.mrb[0].mxu0 %v503
      %v849 = vpop.f32.mrb[0].mxu0
      %v850 = vadd.f32 %v389, %v849
      %v851 = vpop.f32.mrb[0].mxu0
      %v852 = vadd.f32 %v393, %v851
      %v853 = vpop.f32.mrb[0].mxu0
      %v854 = vadd.f32 %v389, %v853
      %v855 = vpop.f32.mrb[0].mxu0
      %v856 = vadd.f32 %v393, %v855
      %857 = vmatprep.mubr.bf16.mxu0 0
      %858 = vmatmul.mubr.bf16.gmra.mrb[0].mxu0 %v506
      %v859 = vpop.f32.mrb[0].mxu0
      %v860 = vadd.f32 %v389, %v859
      %v861 = vpop.f32.mrb[0].mxu0
      %v862 = vadd.f32 %v393, %v861
      %v863 = vpop.f32.mrb[0].mxu0
      %v864 = vadd.f32 %v389, %v863
      %v865 = vpop.f32.mrb[0].mxu0
      %v866 = vadd.f32 %v393, %v865
      %867 = vdwg.mxu0
      %v868 = vmax.f32 %v550, 0.0
      %v869 = vmax.f32 %v552, 0.0
      %v870 = vmax.f32 %v554, 0.0
      %v871 = vmax.f32 %v556, 0.0
      %v872 = vmax.f32 %v560, 0.0
      %v873 = vmax.f32 %v562, 0.0
      %v874 = vmax.f32 %v564, 0.0
      %v875 = vmax.f32 %v566, 0.0
      %v876 = vmax.f32 %v570, 0.0
      %v877 = vmax.f32 %v572, 0.0
      %v878 = vmax.f32 %v574, 0.0
      %v879 = vmax.f32 %v576, 0.0
      %v880 = vmax.f32 %v580, 0.0
      %v881 = vmax.f32 %v582, 0.0
      %v882 = vmax.f32 %v584, 0.0
      %v883 = vmax.f32 %v586, 0.0
      %v884 = vmax.f32 %v590, 0.0
      %v885 = vmax.f32 %v592, 0.0
      %v886 = vmax.f32 %v594, 0.0
      %v887 = vmax.f32 %v596, 0.0
      %v888 = vmax.f32 %v600, 0.0
      %v889 = vmax.f32 %v602, 0.0
      %v890 = vmax.f32 %v604, 0.0
      %v891 = vmax.f32 %v606, 0.0
      %v892 = vmax.f32 %v610, 0.0
      %v893 = vmax.f32 %v612, 0.0
      %v894 = vmax.f32 %v614, 0.0
      %v895 = vmax.f32 %v616, 0.0
      %v896 = vmax.f32 %v620, 0.0
      %v897 = vmax.f32 %v622, 0.0
      %v898 = vmax.f32 %v624, 0.0
      %v899 = vmax.f32 %v626, 0.0
      %v900 = vmax.f32 %v630, 0.0
      %v901 = vmax.f32 %v632, 0.0
      %v902 = vmax.f32 %v634, 0.0
      %v903 = vmax.f32 %v636, 0.0
      %v904 = vmax.f32 %v640, 0.0
      %v905 = vmax.f32 %v642, 0.0
      %v906 = vmax.f32 %v644, 0.0
      %v907 = vmax.f32 %v646, 0.0
      %v908 = vmax.f32 %v650, 0.0
      %v909 = vmax.f32 %v652, 0.0
      %v910 = vmax.f32 %v654, 0.0
      %v911 = vmax.f32 %v656, 0.0
      %v912 = vmax.f32 %v660, 0.0
      %v913 = vmax.f32 %v662, 0.0
      %v914 = vmax.f32 %v664, 0.0
      %v915 = vmax.f32 %v666, 0.0
      %v916 = vmax.f32 %v670, 0.0
      %v917 = vmax.f32 %v672, 0.0
      %v918 = vmax.f32 %v674, 0.0
      %v919 = vmax.f32 %v676, 0.0
      %v920 = vmax.f32 %v680, 0.0
      %v921 = vmax.f32 %v682, 0.0
      %v922 = vmax.f32 %v684, 0.0
      %v923 = vmax.f32 %v686, 0.0
      %v924 = vmax.f32 %v690, 0.0
      %v925 = vmax.f32 %v692, 0.0
      %v926 = vmax.f32 %v694, 0.0
      %v927 = vmax.f32 %v696, 0.0
      %v928 = vmax.f32 %v700, 0.0
      %v929 = vmax.f32 %v702, 0.0
      %v930 = vmax.f32 %v704, 0.0
      %v931 = vmax.f32 %v706, 0.0
      %v932 = vmax.f32 %v710, 0.0
      %v933 = vmax.f32 %v712, 0.0
      %v934 = vmax.f32 %v714, 0.0
      %v935 = vmax.f32 %v716, 0.0
      %v936 = vmax.f32 %v720, 0.0
      %v937 = vmax.f32 %v722, 0.0
      %v938 = vmax.f32 %v724, 0.0
      %v939 = vmax.f32 %v726, 0.0
      %v940 = vmax.f32 %v730, 0.0
      %v941 = vmax.f32 %v732, 0.0
      %v942 = vmax.f32 %v734, 0.0
      %v943 = vmax.f32 %v736, 0.0
      %v944 = vmax.f32 %v740, 0.0
      %v945 = vmax.f32 %v742, 0.0
      %v946 = vmax.f32 %v744, 0.0
      %v947 = vmax.f32 %v746, 0.0
      %v948 = vmax.f32 %v750, 0.0
      %v949 = vmax.f32 %v752, 0.0
      %v950 = vmax.f32 %v754, 0.0
      %v951 = vmax.f32 %v756, 0.0
      %v952 = vmax.f32 %v760, 0.0
      %v953 = vmax.f32 %v762, 0.0
      %v954 = vmax.f32 %v764, 0.0
      %v955 = vmax.f32 %v766, 0.0
      %v956 = vmax.f32 %v770, 0.0
      %v957 = vmax.f32 %v772, 0.0
      %v958 = vmax.f32 %v774, 0.0
      %v959 = vmax.f32 %v776, 0.0
      %v960 = vmax.f32 %v780, 0.0
      %v961 = vmax.f32 %v782, 0.0
      %v962 = vmax.f32 %v784, 0.0
      %v963 = vmax.f32 %v786, 0.0
      %v964 = vmax.f32 %v790, 0.0
      %v965 = vmax.f32 %v792, 0.0
      %v966 = vmax.f32 %v794, 0.0
      %v967 = vmax.f32 %v796, 0.0
      %v968 = vmax.f32 %v800, 0.0
      %v969 = vmax.f32 %v802, 0.0
      %v970 = vmax.f32 %v804, 0.0
      %v971 = vmax.f32 %v806, 0.0
      %v972 = vmax.f32 %v810, 0.0
      %v973 = vmax.f32 %v812, 0.0
      %v974 = vmax.f32 %v814, 0.0
      %v975 = vmax.f32 %v816, 0.0
      %v976 = vmax.f32 %v820, 0.0
      %v977 = vmax.f32 %v822, 0.0
      %v978 = vmax.f32 %v824, 0.0
      %v979 = vmax.f32 %v826, 0.0
      %v980 = vmax.f32 %v830, 0.0
      %v981 = vmax.f32 %v832, 0.0
      %v982 = vmax.f32 %v834, 0.0
      %v983 = vmax.f32 %v836, 0.0
      %v984 = vmax.f32 %v840, 0.0
      %v985 = vmax.f32 %v842, 0.0
      %v986 = vmax.f32 %v844, 0.0
      %v987 = vmax.f32 %v846, 0.0
      %v988 = vmax.f32 %v850, 0.0
      %v989 = vmax.f32 %v852, 0.0
      %v990 = vmax.f32 %v854, 0.0
      %v991 = vmax.f32 %v856, 0.0
      %v992 = vmax.f32 %v860, 0.0
      %v993 = vmax.f32 %v862, 0.0
      %v994 = vmax.f32 %v864, 0.0
      %v995 = vmax.f32 %v866, 0.0
      %v996 = vpack.c.bf16 %v870, %v868
      %v997 = vpack.c.bf16 %v871, %v869
      %v998 = vpack.c.bf16 %v874, %v872
      %v999 = vpack.c.bf16 %v875, %v873
      %v1000 = vpack.c.bf16 %v878, %v876
      %v1001 = vpack.c.bf16 %v879, %v877
      %v1002 = vpack.c.bf16 %v882, %v880
      %v1003 = vpack.c.bf16 %v883, %v881
      %v1004 = vpack.c.bf16 %v886, %v884
      %v1005 = vpack.c.bf16 %v887, %v885
      %v1006 = vpack.c.bf16 %v890, %v888
      %v1007 = vpack.c.bf16 %v891, %v889
      %v1008 = vpack.c.bf16 %v894, %v892
      %v1009 = vpack.c.bf16 %v895, %v893
      %v1010 = vpack.c.bf16 %v898, %v896
      %v1011 = vpack.c.bf16 %v899, %v897
      %v1012 = vpack.c.bf16 %v902, %v900
      %v1013 = vpack.c.bf16 %v903, %v901
      %v1014 = vpack.c.bf16 %v906, %v904
      %v1015 = vpack.c.bf16 %v907, %v905
      %v1016 = vpack.c.bf16 %v910, %v908
      %v1017 = vpack.c.bf16 %v911, %v909
      %v1018 = vpack.c.bf16 %v914, %v912
      %v1019 = vpack.c.bf16 %v915, %v913
      %v1020 = vpack.c.bf16 %v918, %v916
      %v1021 = vpack.c.bf16 %v919, %v917
      %v1022 = vpack.c.bf16 %v922, %v920
      %v1023 = vpack.c.bf16 %v923, %v921
      %v1024 = vpack.c.bf16 %v926, %v924
      %v1025 = vpack.c.bf16 %v927, %v925
      %v1026 = vpack.c.bf16 %v930, %v928
      %v1027 = vpack.c.bf16 %v931, %v929
      %v1028 = vpack.c.bf16 %v934, %v932
      %v1029 = vpack.c.bf16 %v935, %v933
      %v1030 = vpack.c.bf16 %v938, %v936
      %v1031 = vpack.c.bf16 %v939, %v937
      %v1032 = vpack.c.bf16 %v942, %v940
      %v1033 = vpack.c.bf16 %v943, %v941
      %v1034 = vpack.c.bf16 %v946, %v944
      %v1035 = vpack.c.bf16 %v947, %v945
      %v1036 = vpack.c.bf16 %v950, %v948
      %v1037 = vpack.c.bf16 %v951, %v949
      %v1038 = vpack.c.bf16 %v954, %v952
      %v1039 = vpack.c.bf16 %v955, %v953
      %v1040 = vpack.c.bf16 %v958, %v956
      %v1041 = vpack.c.bf16 %v959, %v957
      %v1042 = vpack.c.bf16 %v962, %v960
      %v1043 = vpack.c.bf16 %v963, %v961
      %v1044 = vpack.c.bf16 %v966, %v964
      %v1045 = vpack.c.bf16 %v967, %v965
      %v1046 = vpack.c.bf16 %v970, %v968
      %v1047 = vpack.c.bf16 %v971, %v969
      %v1048 = vpack.c.bf16 %v974, %v972
      %v1049 = vpack.c.bf16 %v975, %v973
      %v1050 = vpack.c.bf16 %v978, %v976
      %v1051 = vpack.c.bf16 %v979, %v977
      %v1052 = vpack.c.bf16 %v982, %v980
      %v1053 = vpack.c.bf16 %v983, %v981
      %v1054 = vpack.c.bf16 %v986, %v984
      %v1055 = vpack.c.bf16 %v987, %v985
      %v1056 = vpack.c.bf16 %v990, %v988
      %v1057 = vpack.c.bf16 %v991, %v989
      %v1058 = vpack.c.bf16 %v994, %v992
      %v1059 = vpack.c.bf16 %v995, %v993
      %v1060 = vld [vmem:[%s3] sm:$0xff]
      %v1061 = vld [vmem:[%s3 + $0x8] sm:$0xff]
      %v1062 = vld [vmem:[%s3 + $0x10] sm:$0xff]
      %v1063 = vld [vmem:[%s3 + $0x18] sm:$0xff]
      %v1064 = vld [vmem:[%s3 + $0x20] sm:$0xff]
      %v1065 = vld [vmem:[%s3 + $0x28] sm:$0xff]
      %v1066 = vld [vmem:[%s3 + $0x30] sm:$0xff]
      %v1067 = vld [vmem:[%s3 + $0x38] sm:$0xff]
      %v1068 = vld [vmem:[%s3 + $0x40] sm:$0xff]
      %v1069 = vld [vmem:[%s3 + $0x48] sm:$0xff]
      %v1070 = vld [vmem:[%s3 + $0x50] sm:$0xff]
      %v1071 = vld [vmem:[%s3 + $0x58] sm:$0xff]
      %v1072 = vld [vmem:[%s3 + $0x60] sm:$0xff]
      %v1073 = vld [vmem:[%s3 + $0x68] sm:$0xff]
      %v1074 = vld [vmem:[%s3 + $0x70] sm:$0xff]
      %v1075 = vld [vmem:[%s3 + $0x78] sm:$0xff]
      %v1076 = vld [vmem:[%s3 + $0x80] sm:$0xff]
      %v1077 = vld [vmem:[%s3 + $0x88] sm:$0xff]
      %v1078 = vld [vmem:[%s3 + $0x90] sm:$0xff]
      %v1079 = vld [vmem:[%s3 + $0x98] sm:$0xff]
      %v1080 = vld [vmem:[%s3 + $0xa0] sm:$0xff]
      %v1081 = vld [vmem:[%s3 + $0xa8] sm:$0xff]
      %v1082 = vld [vmem:[%s3 + $0xb0] sm:$0xff]
      %v1083 = vld [vmem:[%s3 + $0xb8] sm:$0xff]
      %v1084 = vld [vmem:[%s3 + $0xc0] sm:$0xff]
      %v1085 = vld [vmem:[%s3 + $0xc8] sm:$0xff]
      %v1086 = vld [vmem:[%s3 + $0xd0] sm:$0xff]
      %v1087 = vld [vmem:[%s3 + $0xd8] sm:$0xff]
      %v1088 = vld [vmem:[%s3 + $0xe0] sm:$0xff]
      %v1089 = vld [vmem:[%s3 + $0xe8] sm:$0xff]
      %v1090 = vld [vmem:[%s3 + $0xf0] sm:$0xff]
      %v1091 = vld [vmem:[%s3 + $0xf8] sm:$0xff]
      %v1092 = vld [vmem:[%s4] sm:$0x3]
      %v1094 = vlaneseq
      %v1095 = vshrl.u32 %v1094, 7
      %v1096 = vsub.s32 0, %v1095
      %v1097 = vrot.slane %v1092, %v1096
      %v1098 = vlaneseq
      %v1099 = vshrl.u32 %v1098, 7
      %v1100 = vsub.s32 1, %v1099
      %v1101 = vrot.slane %v1092, %v1100
      %v1136 = vunpack.c.l.b16 %v1060
      %v1137 = vunpack.c.h.b16 %v1060
      %v1138 = vunpack.c.l.b16 %v1061
      %v1139 = vunpack.c.h.b16 %v1061
      %v1140 = vunpack.c.l.b16 %v1062
      %v1141 = vunpack.c.h.b16 %v1062
      %v1142 = vunpack.c.l.b16 %v1063
      %v1143 = vunpack.c.h.b16 %v1063
      %v1144 = vunpack.c.l.b16 %v1064
      %v1145 = vunpack.c.h.b16 %v1064
      %v1146 = vunpack.c.l.b16 %v1065
      %v1147 = vunpack.c.h.b16 %v1065
      %v1148 = vunpack.c.l.b16 %v1066
      %v1149 = vunpack.c.h.b16 %v1066
      %v1150 = vunpack.c.l.b16 %v1067
      %v1151 = vunpack.c.h.b16 %v1067
      %v1152 = vunpack.c.l.b16 %v1068
      %v1153 = vunpack.c.h.b16 %v1068
      %v1154 = vunpack.c.l.b16 %v1069
      %v1155 = vunpack.c.h.b16 %v1069
      %v1156 = vunpack.c.l.b16 %v1070
      %v1157 = vunpack.c.h.b16 %v1070
      %v1158 = vunpack.c.l.b16 %v1071
      %v1159 = vunpack.c.h.b16 %v1071
      %v1160 = vunpack.c.l.b16 %v1072
      %v1161 = vunpack.c.h.b16 %v1072
      %v1162 = vunpack.c.l.b16 %v1073
      %v1163 = vunpack.c.h.b16 %v1073
      %v1164 = vunpack.c.l.b16 %v1074
      %v1165 = vunpack.c.h.b16 %v1074
      %v1166 = vunpack.c.l.b16 %v1075
      %v1167 = vunpack.c.h.b16 %v1075
      %v1168 = vunpack.c.l.b16 %v1076
      %v1169 = vunpack.c.h.b16 %v1076
      %v1170 = vunpack.c.l.b16 %v1077
      %v1171 = vunpack.c.h.b16 %v1077
      %v1172 = vunpack.c.l.b16 %v1078
      %v1173 = vunpack.c.h.b16 %v1078
      %v1174 = vunpack.c.l.b16 %v1079
      %v1175 = vunpack.c.h.b16 %v1079
      %v1176 = vunpack.c.l.b16 %v1080
      %v1177 = vunpack.c.h.b16 %v1080
      %v1178 = vunpack.c.l.b16 %v1081
      %v1179 = vunpack.c.h.b16 %v1081
      %v1180 = vunpack.c.l.b16 %v1082
      %v1181 = vunpack.c.h.b16 %v1082
      %v1182 = vunpack.c.l.b16 %v1083
      %v1183 = vunpack.c.h.b16 %v1083
      %v1184 = vunpack.c.l.b16 %v1084
      %v1185 = vunpack.c.h.b16 %v1084
      %v1186 = vunpack.c.l.b16 %v1085
      %v1187 = vunpack.c.h.b16 %v1085
      %v1188 = vunpack.c.l.b16 %v1086
      %v1189 = vunpack.c.h.b16 %v1086
      %v1190 = vunpack.c.l.b16 %v1087
      %v1191 = vunpack.c.h.b16 %v1087
      %v1192 = vunpack.c.l.b16 %v1088
      %v1193 = vunpack.c.h.b16 %v1088
      %v1194 = vunpack.c.l.b16 %v1089
      %v1195 = vunpack.c.h.b16 %v1089
      %v1196 = vunpack.c.l.b16 %v1090
      %v1197 = vunpack.c.h.b16 %v1090
      %v1198 = vunpack.c.l.b16 %v1091
      %v1199 = vunpack.c.h.b16 %v1091
      %v1200 = vpack.c.b16 %v1138, %v1136
      %v1201 = vpack.c.b16 %v1139, %v1137
      %v1202 = vpack.c.b16 %v1142, %v1140
      %v1203 = vpack.c.b16 %v1143, %v1141
      %v1204 = vpack.c.b16 %v1146, %v1144
      %v1205 = vpack.c.b16 %v1147, %v1145
      %v1206 = vpack.c.b16 %v1150, %v1148
      %v1207 = vpack.c.b16 %v1151, %v1149
      %v1208 = vpack.c.b16 %v1154, %v1152
      %v1209 = vpack.c.b16 %v1155, %v1153
      %v1210 = vpack.c.b16 %v1158, %v1156
      %v1211 = vpack.c.b16 %v1159, %v1157
      %v1212 = vpack.c.b16 %v1162, %v1160
      %v1213 = vpack.c.b16 %v1163, %v1161
      %v1214 = vpack.c.b16 %v1166, %v1164
      %v1215 = vpack.c.b16 %v1167, %v1165
      %v1216 = vpack.c.b16 %v1170, %v1168
      %v1217 = vpack.c.b16 %v1171, %v1169
      %v1218 = vpack.c.b16 %v1174, %v1172
      %v1219 = vpack.c.b16 %v1175, %v1173
      %v1220 = vpack.c.b16 %v1178, %v1176
      %v1221 = vpack.c.b16 %v1179, %v1177
      %v1222 = vpack.c.b16 %v1182, %v1180
      %v1223 = vpack.c.b16 %v1183, %v1181
      %v1224 = vpack.c.b16 %v1186, %v1184
      %v1225 = vpack.c.b16 %v1187, %v1185
      %v1226 = vpack.c.b16 %v1190, %v1188
      %v1227 = vpack.c.b16 %v1191, %v1189
      %v1228 = vpack.c.b16 %v1194, %v1192
      %v1229 = vpack.c.b16 %v1195, %v1193
      %v1230 = vpack.c.b16 %v1198, %v1196
      %v1231 = vpack.c.b16 %v1199, %v1197
      %1264 = vmatprep.subr.bf16.mxu0 %v1201
      %1265 = vmatpush1.bf16.msra.mxu0 %v1200
      %1266 = vmatprep.subr.bf16.mxu0 %v1203
      %1267 = vmatpush1.bf16.msra.mxu0 %v1202
      %1268 = vmatprep.subr.bf16.mxu0 %v1205
      %1269 = vmatpush1.bf16.msra.mxu0 %v1204
      %1270 = vmatprep.subr.bf16.mxu0 %v1207
      %1271 = vmatpush1.bf16.msra.mxu0 %v1206
      %1272 = vmatprep.subr.bf16.mxu0 %v1209
      %1273 = vmatpush1.bf16.msra.mxu0 %v1208
      %1274 = vmatprep.subr.bf16.mxu0 %v1211
      %1275 = vmatpush1.bf16.msra.mxu0 %v1210
      %1276 = vmatprep.subr.bf16.mxu0 %v1213
      %1277 = vmatpush1.bf16.msra.mxu0 %v1212
      %1278 = vmatprep.subr.bf16.mxu0 %v1215
      %1279 = vmatpush1.bf16.msra.mxu0 %v1214
      %1280 = vmatprep.subr.bf16.mxu0 %v1217
      %1281 = vmatpush1.bf16.msra.mxu0 %v1216
      %1282 = vmatprep.subr.bf16.mxu0 %v1219
      %1283 = vmatpush1.bf16.msra.mxu0 %v1218
      %1284 = vmatprep.subr.bf16.mxu0 %v1221
      %1285 = vmatpush1.bf16.msra.mxu0 %v1220
      %1286 = vmatprep.subr.bf16.mxu0 %v1223
      %1287 = vmatpush1.bf16.msra.mxu0 %v1222
      %1288 = vmatprep.subr.bf16.mxu0 %v1225
      %1289 = vmatpush1.bf16.msra.mxu0 %v1224
      %1290 = vmatprep.subr.bf16.mxu0 %v1227
      %1291 = vmatpush1.bf16.msra.mxu0 %v1226
      %1292 = vmatprep.subr.bf16.mxu0 %v1229
      %1293 = vmatpush1.bf16.msra.mxu0 %v1228
      %1294 = vmatprep.subr.bf16.mxu0 %v1231
      %1295 = vmatpush1.bf16.msra.mxu0 %v1230
      %1296 = vmatprep.mubr.bf16.mxu0 %v997
      %1297 = vmatmul.mubr.bf16.gmra.mrb[0].mxu0 %v996
      %v1298 = vpop.f32.mrb[0].mxu0
      %v1299 = vadd.f32 %v1097, %v1298
      %v1300 = vpop.f32.mrb[0].mxu0
      %v1301 = vadd.f32 %v1101, %v1300
      %v1302 = vpop.f32.mrb[0].mxu0
      %v1303 = vadd.f32 %v1097, %v1302
      %v1304 = vpop.f32.mrb[0].mxu0
      %v1305 = vadd.f32 %v1101, %v1304
      %1306 = vmatprep.mubr.bf16.mxu0 %v999
      %1307 = vmatmul.mubr.bf16.gmra.mrb[0].mxu0 %v998
      %v1308 = vpop.f32.mrb[0].mxu0
      %v1309 = vadd.f32 %v1097, %v1308
      %v1310 = vpop.f32.mrb[0].mxu0
      %v1311 = vadd.f32 %v1101, %v1310
      %v1312 = vpop.f32.mrb[0].mxu0
      %v1313 = vadd.f32 %v1097, %v1312
      %v1314 = vpop.f32.mrb[0].mxu0
      %v1315 = vadd.f32 %v1101, %v1314
      %1316 = vmatprep.mubr.bf16.mxu0 %v1001
      %1317 = vmatmul.mubr.bf16.gmra.mrb[0].mxu0 %v1000
      %v1318 = vpop.f32.mrb[0].mxu0
      %v1319 = vadd.f32 %v1097, %v1318
      %v1320 = vpop.f32.mrb[0].mxu0
      %v1321 = vadd.f32 %v1101, %v1320
      %v1322 = vpop.f32.mrb[0].mxu0
      %v1323 = vadd.f32 %v1097, %v1322
      %v1324 = vpop.f32.mrb[0].mxu0
      %v1325 = vadd.f32 %v1101, %v1324
      %1326 = vmatprep.mubr.bf16.mxu0 %v1003
      %1327 = vmatmul.mubr.bf16.gmra.mrb[0].mxu0 %v1002
      %v1328 = vpop.f32.mrb[0].mxu0
      %v1329 = vadd.f32 %v1097, %v1328
      %v1330 = vpop.f32.mrb[0].mxu0
      %v1331 = vadd.f32 %v1101, %v1330
      %v1332 = vpop.f32.mrb[0].mxu0
      %v1333 = vadd.f32 %v1097, %v1332
      %v1334 = vpop.f32.mrb[0].mxu0
      %v1335 = vadd.f32 %v1101, %v1334
      %1336 = vmatprep.mubr.bf16.mxu0 %v1005
      %1337 = vmatmul.mubr.bf16.gmra.mrb[0].mxu0 %v1004
      %v1338 = vpop.f32.mrb[0].mxu0
      %v1339 = vadd.f32 %v1097, %v1338
      %v1340 = vpop.f32.mrb[0].mxu0
      %v1341 = vadd.f32 %v1101, %v1340
      %v1342 = vpop.f32.mrb[0].mxu0
      %v1343 = vadd.f32 %v1097, %v1342
      %v1344 = vpop.f32.mrb[0].mxu0
      %v1345 = vadd.f32 %v1101, %v1344
      %1346 = vmatprep.mubr.bf16.mxu0 %v1007
      %1347 = vmatmul.mubr.bf16.gmra.mrb[0].mxu0 %v1006
      %v1348 = vpop.f32.mrb[0].mxu0
      %v1349 = vadd.f32 %v1097, %v1348
      %v1350 = vpop.f32.mrb[0].mxu0
      %v1351 = vadd.f32 %v1101, %v1350
      %v1352 = vpop.f32.mrb[0].mxu0
      %v1353 = vadd.f32 %v1097, %v1352
      %v1354 = vpop.f32.mrb[0].mxu0
      %v1355 = vadd.f32 %v1101, %v1354
      %1356 = vmatprep.mubr.bf16.mxu0 %v1009
      %1357 = vmatmul.mubr.bf16.gmra.mrb[0].mxu0 %v1008
      %v1358 = vpop.f32.mrb[0].mxu0
      %v1359 = vadd.f32 %v1097, %v1358
      %v1360 = vpop.f32.mrb[0].mxu0
      %v1361 = vadd.f32 %v1101, %v1360
      %v1362 = vpop.f32.mrb[0].mxu0
      %v1363 = vadd.f32 %v1097, %v1362
      %v1364 = vpop.f32.mrb[0].mxu0
      %v1365 = vadd.f32 %v1101, %v1364
      %1366 = vmatprep.mubr.bf16.mxu0 %v1011
      %1367 = vmatmul.mubr.bf16.gmra.mrb[0].mxu0 %v1010
      %v1368 = vpop.f32.mrb[0].mxu0
      %v1369 = vadd.f32 %v1097, %v1368
      %v1370 = vpop.f32.mrb[0].mxu0
      %v1371 = vadd.f32 %v1101, %v1370
      %v1372 = vpop.f32.mrb[0].mxu0
      %v1373 = vadd.f32 %v1097, %v1372
      %v1374 = vpop.f32.mrb[0].mxu0
      %v1375 = vadd.f32 %v1101, %v1374
      %1376 = vmatprep.mubr.bf16.mxu0 %v1013
      %1377 = vmatmul.mubr.bf16.gmra.mrb[0].mxu0 %v1012
      %v1378 = vpop.f32.mrb[0].mxu0
      %v1379 = vadd.f32 %v1097, %v1378
      %v1380 = vpop.f32.mrb[0].mxu0
      %v1381 = vadd.f32 %v1101, %v1380
      %v1382 = vpop.f32.mrb[0].mxu0
      %v1383 = vadd.f32 %v1097, %v1382
      %v1384 = vpop.f32.mrb[0].mxu0
      %v1385 = vadd.f32 %v1101, %v1384
      %1386 = vmatprep.mubr.bf16.mxu0 %v1015
      %1387 = vmatmul.mubr.bf16.gmra.mrb[0].mxu0 %v1014
      %v1388 = vpop.f32.mrb[0].mxu0
      %v1389 = vadd.f32 %v1097, %v1388
      %v1390 = vpop.f32.mrb[0].mxu0
      %v1391 = vadd.f32 %v1101, %v1390
      %v1392 = vpop.f32.mrb[0].mxu0
      %v1393 = vadd.f32 %v1097, %v1392
      %v1394 = vpop.f32.mrb[0].mxu0
      %v1395 = vadd.f32 %v1101, %v1394
      %1396 = vmatprep.mubr.bf16.mxu0 %v1017
      %1397 = vmatmul.mubr.bf16.gmra.mrb[0].mxu0 %v1016
      %v1398 = vpop.f32.mrb[0].mxu0
      %v1399 = vadd.f32 %v1097, %v1398
      %v1400 = vpop.f32.mrb[0].mxu0
      %v1401 = vadd.f32 %v1101, %v1400
      %v1402 = vpop.f32.mrb[0].mxu0
      %v1403 = vadd.f32 %v1097, %v1402
      %v1404 = vpop.f32.mrb[0].mxu0
      %v1405 = vadd.f32 %v1101, %v1404
      %1406 = vmatprep.mubr.bf16.mxu0 %v1019
      %1407 = vmatmul.mubr.bf16.gmra.mrb[0].mxu0 %v1018
      %v1408 = vpop.f32.mrb[0].mxu0
      %v1409 = vadd.f32 %v1097, %v1408
      %v1410 = vpop.f32.mrb[0].mxu0
      %v1411 = vadd.f32 %v1101, %v1410
      %v1412 = vpop.f32.mrb[0].mxu0
      %v1413 = vadd.f32 %v1097, %v1412
      %v1414 = vpop.f32.mrb[0].mxu0
      %v1415 = vadd.f32 %v1101, %v1414
      %1416 = vmatprep.mubr.bf16.mxu0 %v1021
      %1417 = vmatmul.mubr.bf16.gmra.mrb[0].mxu0 %v1020
      %v1418 = vpop.f32.mrb[0].mxu0
      %v1419 = vadd.f32 %v1097, %v1418
      %v1420 = vpop.f32.mrb[0].mxu0
      %v1421 = vadd.f32 %v1101, %v1420
      %v1422 = vpop.f32.mrb[0].mxu0
      %v1423 = vadd.f32 %v1097, %v1422
      %v1424 = vpop.f32.mrb[0].mxu0
      %v1425 = vadd.f32 %v1101, %v1424
      %1426 = vmatprep.mubr.bf16.mxu0 %v1023
      %1427 = vmatmul.mubr.bf16.gmra.mrb[0].mxu0 %v1022
      %v1428 = vpop.f32.mrb[0].mxu0
      %v1429 = vadd.f32 %v1097, %v1428
      %v1430 = vpop.f32.mrb[0].mxu0
      %v1431 = vadd.f32 %v1101, %v1430
      %v1432 = vpop.f32.mrb[0].mxu0
      %v1433 = vadd.f32 %v1097, %v1432
      %v1434 = vpop.f32.mrb[0].mxu0
      %v1435 = vadd.f32 %v1101, %v1434
      %1436 = vmatprep.mubr.bf16.mxu0 %v1025
      %1437 = vmatmul.mubr.bf16.gmra.mrb[0].mxu0 %v1024
      %v1438 = vpop.f32.mrb[0].mxu0
      %v1439 = vadd.f32 %v1097, %v1438
      %v1440 = vpop.f32.mrb[0].mxu0
      %v1441 = vadd.f32 %v1101, %v1440
      %v1442 = vpop.f32.mrb[0].mxu0
      %v1443 = vadd.f32 %v1097, %v1442
      %v1444 = vpop.f32.mrb[0].mxu0
      %v1445 = vadd.f32 %v1101, %v1444
      %1446 = vmatprep.mubr.bf16.mxu0 %v1027
      %1447 = vmatmul.mubr.bf16.gmra.mrb[0].mxu0 %v1026
      %v1448 = vpop.f32.mrb[0].mxu0
      %v1449 = vadd.f32 %v1097, %v1448
      %v1450 = vpop.f32.mrb[0].mxu0
      %v1451 = vadd.f32 %v1101, %v1450
      %v1452 = vpop.f32.mrb[0].mxu0
      %v1453 = vadd.f32 %v1097, %v1452
      %v1454 = vpop.f32.mrb[0].mxu0
      %v1455 = vadd.f32 %v1101, %v1454
      %1456 = vmatprep.mubr.bf16.mxu0 %v1029
      %1457 = vmatmul.mubr.bf16.gmra.mrb[0].mxu0 %v1028
      %v1458 = vpop.f32.mrb[0].mxu0
      %v1459 = vadd.f32 %v1097, %v1458
      %v1460 = vpop.f32.mrb[0].mxu0
      %v1461 = vadd.f32 %v1101, %v1460
      %v1462 = vpop.f32.mrb[0].mxu0
      %v1463 = vadd.f32 %v1097, %v1462
      %v1464 = vpop.f32.mrb[0].mxu0
      %v1465 = vadd.f32 %v1101, %v1464
      %1466 = vmatprep.mubr.bf16.mxu0 %v1031
      %1467 = vmatmul.mubr.bf16.gmra.mrb[0].mxu0 %v1030
      %v1468 = vpop.f32.mrb[0].mxu0
      %v1469 = vadd.f32 %v1097, %v1468
      %v1470 = vpop.f32.mrb[0].mxu0
      %v1471 = vadd.f32 %v1101, %v1470
      %v1472 = vpop.f32.mrb[0].mxu0
      %v1473 = vadd.f32 %v1097, %v1472
      %v1474 = vpop.f32.mrb[0].mxu0
      %v1475 = vadd.f32 %v1101, %v1474
      %1476 = vmatprep.mubr.bf16.mxu0 %v1033
      %1477 = vmatmul.mubr.bf16.gmra.mrb[0].mxu0 %v1032
      %v1478 = vpop.f32.mrb[0].mxu0
      %v1479 = vadd.f32 %v1097, %v1478
      %v1480 = vpop.f32.mrb[0].mxu0
      %v1481 = vadd.f32 %v1101, %v1480
      %v1482 = vpop.f32.mrb[0].mxu0
      %v1483 = vadd.f32 %v1097, %v1482
      %v1484 = vpop.f32.mrb[0].mxu0
      %v1485 = vadd.f32 %v1101, %v1484
      %1486 = vmatprep.mubr.bf16.mxu0 %v1035
      %1487 = vmatmul.mubr.bf16.gmra.mrb[0].mxu0 %v1034
      %v1488 = vpop.f32.mrb[0].mxu0
      %v1489 = vadd.f32 %v1097, %v1488
      %v1490 = vpop.f32.mrb[0].mxu0
      %v1491 = vadd.f32 %v1101, %v1490
      %v1492 = vpop.f32.mrb[0].mxu0
      %v1493 = vadd.f32 %v1097, %v1492
      %v1494 = vpop.f32.mrb[0].mxu0
      %v1495 = vadd.f32 %v1101, %v1494
      %1496 = vmatprep.mubr.bf16.mxu0 %v1037
      %1497 = vmatmul.mubr.bf16.gmra.mrb[0].mxu0 %v1036
      %v1498 = vpop.f32.mrb[0].mxu0
      %v1499 = vadd.f32 %v1097, %v1498
      %v1500 = vpop.f32.mrb[0].mxu0
      %v1501 = vadd.f32 %v1101, %v1500
      %v1502 = vpop.f32.mrb[0].mxu0
      %v1503 = vadd.f32 %v1097, %v1502
      %v1504 = vpop.f32.mrb[0].mxu0
      %v1505 = vadd.f32 %v1101, %v1504
      %1506 = vmatprep.mubr.bf16.mxu0 %v1039
      %1507 = vmatmul.mubr.bf16.gmra.mrb[0].mxu0 %v1038
      %v1508 = vpop.f32.mrb[0].mxu0
      %v1509 = vadd.f32 %v1097, %v1508
      %v1510 = vpop.f32.mrb[0].mxu0
      %v1511 = vadd.f32 %v1101, %v1510
      %v1512 = vpop.f32.mrb[0].mxu0
      %v1513 = vadd.f32 %v1097, %v1512
      %v1514 = vpop.f32.mrb[0].mxu0
      %v1515 = vadd.f32 %v1101, %v1514
      %1516 = vmatprep.mubr.bf16.mxu0 %v1041
      %1517 = vmatmul.mubr.bf16.gmra.mrb[0].mxu0 %v1040
      %v1518 = vpop.f32.mrb[0].mxu0
      %v1519 = vadd.f32 %v1097, %v1518
      %v1520 = vpop.f32.mrb[0].mxu0
      %v1521 = vadd.f32 %v1101, %v1520
      %v1522 = vpop.f32.mrb[0].mxu0
      %v1523 = vadd.f32 %v1097, %v1522
      %v1524 = vpop.f32.mrb[0].mxu0
      %v1525 = vadd.f32 %v1101, %v1524
      %1526 = vmatprep.mubr.bf16.mxu0 %v1043
      %1527 = vmatmul.mubr.bf16.gmra.mrb[0].mxu0 %v1042
      %v1528 = vpop.f32.mrb[0].mxu0
      %v1529 = vadd.f32 %v1097, %v1528
      %v1530 = vpop.f32.mrb[0].mxu0
      %v1531 = vadd.f32 %v1101, %v1530
      %v1532 = vpop.f32.mrb[0].mxu0
      %v1533 = vadd.f32 %v1097, %v1532
      %v1534 = vpop.f32.mrb[0].mxu0
      %v1535 = vadd.f32 %v1101, %v1534
      %1536 = vmatprep.mubr.bf16.mxu0 %v1045
      %1537 = vmatmul.mubr.bf16.gmra.mrb[0].mxu0 %v1044
      %v1538 = vpop.f32.mrb[0].mxu0
      %v1539 = vadd.f32 %v1097, %v1538
      %v1540 = vpop.f32.mrb[0].mxu0
      %v1541 = vadd.f32 %v1101, %v1540
      %v1542 = vpop.f32.mrb[0].mxu0
      %v1543 = vadd.f32 %v1097, %v1542
      %v1544 = vpop.f32.mrb[0].mxu0
      %v1545 = vadd.f32 %v1101, %v1544
      %1546 = vmatprep.mubr.bf16.mxu0 %v1047
      %1547 = vmatmul.mubr.bf16.gmra.mrb[0].mxu0 %v1046
      %v1548 = vpop.f32.mrb[0].mxu0
      %v1549 = vadd.f32 %v1097, %v1548
      %v1550 = vpop.f32.mrb[0].mxu0
      %v1551 = vadd.f32 %v1101, %v1550
      %v1552 = vpop.f32.mrb[0].mxu0
      %v1553 = vadd.f32 %v1097, %v1552
      %v1554 = vpop.f32.mrb[0].mxu0
      %v1555 = vadd.f32 %v1101, %v1554
      %1556 = vmatprep.mubr.bf16.mxu0 %v1049
      %1557 = vmatmul.mubr.bf16.gmra.mrb[0].mxu0 %v1048
      %v1558 = vpop.f32.mrb[0].mxu0
      %v1559 = vadd.f32 %v1097, %v1558
      %v1560 = vpop.f32.mrb[0].mxu0
      %v1561 = vadd.f32 %v1101, %v1560
      %v1562 = vpop.f32.mrb[0].mxu0
      %v1563 = vadd.f32 %v1097, %v1562
      %v1564 = vpop.f32.mrb[0].mxu0
      %v1565 = vadd.f32 %v1101, %v1564
      %1566 = vmatprep.mubr.bf16.mxu0 %v1051
      %1567 = vmatmul.mubr.bf16.gmra.mrb[0].mxu0 %v1050
      %v1568 = vpop.f32.mrb[0].mxu0
      %v1569 = vadd.f32 %v1097, %v1568
      %v1570 = vpop.f32.mrb[0].mxu0
      %v1571 = vadd.f32 %v1101, %v1570
      %v1572 = vpop.f32.mrb[0].mxu0
      %v1573 = vadd.f32 %v1097, %v1572
      %v1574 = vpop.f32.mrb[0].mxu0
      %v1575 = vadd.f32 %v1101, %v1574
      %1576 = vmatprep.mubr.bf16.mxu0 %v1053
      %1577 = vmatmul.mubr.bf16.gmra.mrb[0].mxu0 %v1052
      %v1578 = vpop.f32.mrb[0].mxu0
      %v1579 = vadd.f32 %v1097, %v1578
      %v1580 = vpop.f32.mrb[0].mxu0
      %v1581 = vadd.f32 %v1101, %v1580
      %v1582 = vpop.f32.mrb[0].mxu0
      %v1583 = vadd.f32 %v1097, %v1582
      %v1584 = vpop.f32.mrb[0].mxu0
      %v1585 = vadd.f32 %v1101, %v1584
      %1586 = vmatprep.mubr.bf16.mxu0 %v1055
      %1587 = vmatmul.mubr.bf16.gmra.mrb[0].mxu0 %v1054
      %v1588 = vpop.f32.mrb[0].mxu0
      %v1589 = vadd.f32 %v1097, %v1588
      %v1590 = vpop.f32.mrb[0].mxu0
      %v1591 = vadd.f32 %v1101, %v1590
      %v1592 = vpop.f32.mrb[0].mxu0
      %v1593 = vadd.f32 %v1097, %v1592
      %v1594 = vpop.f32.mrb[0].mxu0
      %v1595 = vadd.f32 %v1101, %v1594
      %1596 = vmatprep.mubr.bf16.mxu0 %v1057
      %1597 = vmatmul.mubr.bf16.gmra.mrb[0].mxu0 %v1056
      %v1598 = vpop.f32.mrb[0].mxu0
      %v1599 = vadd.f32 %v1097, %v1598
      %v1600 = vpop.f32.mrb[0].mxu0
      %v1601 = vadd.f32 %v1101, %v1600
      %v1602 = vpop.f32.mrb[0].mxu0
      %v1603 = vadd.f32 %v1097, %v1602
      %v1604 = vpop.f32.mrb[0].mxu0
      %v1605 = vadd.f32 %v1101, %v1604
      %1606 = vmatprep.mubr.bf16.mxu0 %v1059
      %1607 = vmatmul.mubr.bf16.gmra.mrb[0].mxu0 %v1058
      %v1608 = vpop.f32.mrb[0].mxu0
      %v1609 = vadd.f32 %v1097, %v1608
      %v1610 = vpop.f32.mrb[0].mxu0
      %v1611 = vadd.f32 %v1101, %v1610
      %v1612 = vpop.f32.mrb[0].mxu0
      %v1613 = vadd.f32 %v1097, %v1612
      %v1614 = vpop.f32.mrb[0].mxu0
      %v1615 = vadd.f32 %v1101, %v1614
      %1616 = vdwg.mxu0
      %v1617 = vmax.f32 %v1299, 0.0
      %v1618 = vmax.f32 %v1301, 0.0
      %v1619 = vmax.f32 %v1303, 0.0
      %v1620 = vmax.f32 %v1305, 0.0
      %v1621 = vmax.f32 %v1309, 0.0
      %v1622 = vmax.f32 %v1311, 0.0
      %v1623 = vmax.f32 %v1313, 0.0
      %v1624 = vmax.f32 %v1315, 0.0
      %v1625 = vmax.f32 %v1319, 0.0
      %v1626 = vmax.f32 %v1321, 0.0
      %v1627 = vmax.f32 %v1323, 0.0
      %v1628 = vmax.f32 %v1325, 0.0
      %v1629 = vmax.f32 %v1329, 0.0
      %v1630 = vmax.f32 %v1331, 0.0
      %v1631 = vmax.f32 %v1333, 0.0
      %v1632 = vmax.f32 %v1335, 0.0
      %v1633 = vmax.f32 %v1339, 0.0
      %v1634 = vmax.f32 %v1341, 0.0
      %v1635 = vmax.f32 %v1343, 0.0
      %v1636 = vmax.f32 %v1345, 0.0
      %v1637 = vmax.f32 %v1349, 0.0
      %v1638 = vmax.f32 %v1351, 0.0
      %v1639 = vmax.f32 %v1353, 0.0
      %v1640 = vmax.f32 %v1355, 0.0
      %v1641 = vmax.f32 %v1359, 0.0
      %v1642 = vmax.f32 %v1361, 0.0
      %v1643 = vmax.f32 %v1363, 0.0
      %v1644 = vmax.f32 %v1365, 0.0
      %v1645 = vmax.f32 %v1369, 0.0
      %v1646 = vmax.f32 %v1371, 0.0
      %v1647 = vmax.f32 %v1373, 0.0
      %v1648 = vmax.f32 %v1375, 0.0
      %v1649 = vmax.f32 %v1379, 0.0
      %v1650 = vmax.f32 %v1381, 0.0
      %v1651 = vmax.f32 %v1383, 0.0
      %v1652 = vmax.f32 %v1385, 0.0
      %v1653 = vmax.f32 %v1389, 0.0
      %v1654 = vmax.f32 %v1391, 0.0
      %v1655 = vmax.f32 %v1393, 0.0
      %v1656 = vmax.f32 %v1395, 0.0
      %v1657 = vmax.f32 %v1399, 0.0
      %v1658 = vmax.f32 %v1401, 0.0
      %v1659 = vmax.f32 %v1403, 0.0
      %v1660 = vmax.f32 %v1405, 0.0
      %v1661 = vmax.f32 %v1409, 0.0
      %v1662 = vmax.f32 %v1411, 0.0
      %v1663 = vmax.f32 %v1413, 0.0
      %v1664 = vmax.f32 %v1415, 0.0
      %v1665 = vmax.f32 %v1419, 0.0
      %v1666 = vmax.f32 %v1421, 0.0
      %v1667 = vmax.f32 %v1423, 0.0
      %v1668 = vmax.f32 %v1425, 0.0
      %v1669 = vmax.f32 %v1429, 0.0
      %v1670 = vmax.f32 %v1431, 0.0
      %v1671 = vmax.f32 %v1433, 0.0
      %v1672 = vmax.f32 %v1435, 0.0
      %v1673 = vmax.f32 %v1439, 0.0
      %v1674 = vmax.f32 %v1441, 0.0
      %v1675 = vmax.f32 %v1443, 0.0
      %v1676 = vmax.f32 %v1445, 0.0
      %v1677 = vmax.f32 %v1449, 0.0
      %v1678 = vmax.f32 %v1451, 0.0
      %v1679 = vmax.f32 %v1453, 0.0
      %v1680 = vmax.f32 %v1455, 0.0
      %v1681 = vmax.f32 %v1459, 0.0
      %v1682 = vmax.f32 %v1461, 0.0
      %v1683 = vmax.f32 %v1463, 0.0
      %v1684 = vmax.f32 %v1465, 0.0
      %v1685 = vmax.f32 %v1469, 0.0
      %v1686 = vmax.f32 %v1471, 0.0
      %v1687 = vmax.f32 %v1473, 0.0
      %v1688 = vmax.f32 %v1475, 0.0
      %v1689 = vmax.f32 %v1479, 0.0
      %v1690 = vmax.f32 %v1481, 0.0
      %v1691 = vmax.f32 %v1483, 0.0
      %v1692 = vmax.f32 %v1485, 0.0
      %v1693 = vmax.f32 %v1489, 0.0
      %v1694 = vmax.f32 %v1491, 0.0
      %v1695 = vmax.f32 %v1493, 0.0
      %v1696 = vmax.f32 %v1495, 0.0
      %v1697 = vmax.f32 %v1499, 0.0
      %v1698 = vmax.f32 %v1501, 0.0
      %v1699 = vmax.f32 %v1503, 0.0
      %v1700 = vmax.f32 %v1505, 0.0
      %v1701 = vmax.f32 %v1509, 0.0
      %v1702 = vmax.f32 %v1511, 0.0
      %v1703 = vmax.f32 %v1513, 0.0
      %v1704 = vmax.f32 %v1515, 0.0
      %v1705 = vmax.f32 %v1519, 0.0
      %v1706 = vmax.f32 %v1521, 0.0
      %v1707 = vmax.f32 %v1523, 0.0
      %v1708 = vmax.f32 %v1525, 0.0
      %v1709 = vmax.f32 %v1529, 0.0
      %v1710 = vmax.f32 %v1531, 0.0
      %v1711 = vmax.f32 %v1533, 0.0
      %v1712 = vmax.f32 %v1535, 0.0
      %v1713 = vmax.f32 %v1539, 0.0
      %v1714 = vmax.f32 %v1541, 0.0
      %v1715 = vmax.f32 %v1543, 0.0
      %v1716 = vmax.f32 %v1545, 0.0
      %v1717 = vmax.f32 %v1549, 0.0
      %v1718 = vmax.f32 %v1551, 0.0
      %v1719 = vmax.f32 %v1553, 0.0
      %v1720 = vmax.f32 %v1555, 0.0
      %v1721 = vmax.f32 %v1559, 0.0
      %v1722 = vmax.f32 %v1561, 0.0
      %v1723 = vmax.f32 %v1563, 0.0
      %v1724 = vmax.f32 %v1565, 0.0
      %v1725 = vmax.f32 %v1569, 0.0
      %v1726 = vmax.f32 %v1571, 0.0
      %v1727 = vmax.f32 %v1573, 0.0
      %v1728 = vmax.f32 %v1575, 0.0
      %v1729 = vmax.f32 %v1579, 0.0
      %v1730 = vmax.f32 %v1581, 0.0
      %v1731 = vmax.f32 %v1583, 0.0
      %v1732 = vmax.f32 %v1585, 0.0
      %v1733 = vmax.f32 %v1589, 0.0
      %v1734 = vmax.f32 %v1591, 0.0
      %v1735 = vmax.f32 %v1593, 0.0
      %v1736 = vmax.f32 %v1595, 0.0
      %v1737 = vmax.f32 %v1599, 0.0
      %v1738 = vmax.f32 %v1601, 0.0
      %v1739 = vmax.f32 %v1603, 0.0
      %v1740 = vmax.f32 %v1605, 0.0
      %v1741 = vmax.f32 %v1609, 0.0
      %v1742 = vmax.f32 %v1611, 0.0
      %v1743 = vmax.f32 %v1613, 0.0
      %v1744 = vmax.f32 %v1615, 0.0
      %v1745 = vld [vmem:[%s5] sm:$0x3]
      %v1747 = vlaneseq
      %v1748 = vshrl.u32 %v1747, 7
      %v1749 = vsub.s32 0, %v1748
      %v1750 = vrot.slane %v1745, %v1749
      %v1751 = vlaneseq
      %v1752 = vshrl.u32 %v1751, 7
      %v1753 = vsub.s32 1, %v1752
      %v1754 = vrot.slane %v1745, %v1753
      %v1757 = vmul.f32 %v1617, %v1750
      %v1758 = vmul.f32 %v1618, %v1754
      %v1759 = vmul.f32 %v1619, %v1750
      %v1760 = vmul.f32 %v1620, %v1754
      %v1761 = vmul.f32 %v1621, %v1750
      %v1762 = vmul.f32 %v1622, %v1754
      %v1763 = vmul.f32 %v1623, %v1750
      %v1764 = vmul.f32 %v1624, %v1754
      %v1765 = vmul.f32 %v1625, %v1750
      %v1766 = vmul.f32 %v1626, %v1754
      %v1767 = vmul.f32 %v1627, %v1750
      %v1768 = vmul.f32 %v1628, %v1754
      %v1769 = vmul.f32 %v1629, %v1750
      %v1770 = vmul.f32 %v1630, %v1754
      %v1771 = vmul.f32 %v1631, %v1750
      %v1772 = vmul.f32 %v1632, %v1754
      %v1773 = vmul.f32 %v1633, %v1750
      %v1774 = vmul.f32 %v1634, %v1754
      %v1775 = vmul.f32 %v1635, %v1750
      %v1776 = vmul.f32 %v1636, %v1754
      %v1777 = vmul.f32 %v1637, %v1750
      %v1778 = vmul.f32 %v1638, %v1754
      %v1779 = vmul.f32 %v1639, %v1750
      %v1780 = vmul.f32 %v1640, %v1754
      %v1781 = vmul.f32 %v1641, %v1750
      %v1782 = vmul.f32 %v1642, %v1754
      %v1783 = vmul.f32 %v1643, %v1750
      %v1784 = vmul.f32 %v1644, %v1754
      %v1785 = vmul.f32 %v1645, %v1750
      %v1786 = vmul.f32 %v1646, %v1754
      %v1787 = vmul.f32 %v1647, %v1750
      %v1788 = vmul.f32 %v1648, %v1754
      %v1789 = vmul.f32 %v1649, %v1750
      %v1790 = vmul.f32 %v1650, %v1754
      %v1791 = vmul.f32 %v1651, %v1750
      %v1792 = vmul.f32 %v1652, %v1754
      %v1793 = vmul.f32 %v1653, %v1750
      %v1794 = vmul.f32 %v1654, %v1754
      %v1795 = vmul.f32 %v1655, %v1750
      %v1796 = vmul.f32 %v1656, %v1754
      %v1797 = vmul.f32 %v1657, %v1750
      %v1798 = vmul.f32 %v1658, %v1754
      %v1799 = vmul.f32 %v1659, %v1750
      %v1800 = vmul.f32 %v1660, %v1754
      %v1801 = vmul.f32 %v1661, %v1750
      %v1802 = vmul.f32 %v1662, %v1754
      %v1803 = vmul.f32 %v1663, %v1750
      %v1804 = vmul.f32 %v1664, %v1754
      %v1805 = vmul.f32 %v1665, %v1750
      %v1806 = vmul.f32 %v1666, %v1754
      %v1807 = vmul.f32 %v1667, %v1750
      %v1808 = vmul.f32 %v1668, %v1754
      %v1809 = vmul.f32 %v1669, %v1750
      %v1810 = vmul.f32 %v1670, %v1754
      %v1811 = vmul.f32 %v1671, %v1750
      %v1812 = vmul.f32 %v1672, %v1754
      %v1813 = vmul.f32 %v1673, %v1750
      %v1814 = vmul.f32 %v1674, %v1754
      %v1815 = vmul.f32 %v1675, %v1750
      %v1816 = vmul.f32 %v1676, %v1754
      %v1817 = vmul.f32 %v1677, %v1750
      %v1818 = vmul.f32 %v1678, %v1754
      %v1819 = vmul.f32 %v1679, %v1750
      %v1820 = vmul.f32 %v1680, %v1754
      %v1821 = vmul.f32 %v1681, %v1750
      %v1822 = vmul.f32 %v1682, %v1754
      %v1823 = vmul.f32 %v1683, %v1750
      %v1824 = vmul.f32 %v1684, %v1754
      %v1825 = vmul.f32 %v1685, %v1750
      %v1826 = vmul.f32 %v1686, %v1754
      %v1827 = vmul.f32 %v1687, %v1750
      %v1828 = vmul.f32 %v1688, %v1754
      %v1829 = vmul.f32 %v1689, %v1750
      %v1830 = vmul.f32 %v1690, %v1754
      %v1831 = vmul.f32 %v1691, %v1750
      %v1832 = vmul.f32 %v1692, %v1754
      %v1833 = vmul.f32 %v1693, %v1750
      %v1834 = vmul.f32 %v1694, %v1754
      %v1835 = vmul.f32 %v1695, %v1750
      %v1836 = vmul.f32 %v1696, %v1754
      %v1837 = vmul.f32 %v1697, %v1750
      %v1838 = vmul.f32 %v1698, %v1754
      %v1839 = vmul.f32 %v1699, %v1750
      %v1840 = vmul.f32 %v1700, %v1754
      %v1841 = vmul.f32 %v1701, %v1750
      %v1842 = vmul.f32 %v1702, %v1754
      %v1843 = vmul.f32 %v1703, %v1750
      %v1844 = vmul.f32 %v1704, %v1754
      %v1845 = vmul.f32 %v1705, %v1750
      %v1846 = vmul.f32 %v1706, %v1754
      %v1847 = vmul.f32 %v1707, %v1750
      %v1848 = vmul.f32 %v1708, %v1754
      %v1849 = vmul.f32 %v1709, %v1750
      %v1850 = vmul.f32 %v1710, %v1754
      %v1851 = vmul.f32 %v1711, %v1750
      %v1852 = vmul.f32 %v1712, %v1754
      %v1853 = vmul.f32 %v1713, %v1750
      %v1854 = vmul.f32 %v1714, %v1754
      %v1855 = vmul.f32 %v1715, %v1750
      %v1856 = vmul.f32 %v1716, %v1754
      %v1857 = vmul.f32 %v1717, %v1750
      %v1858 = vmul.f32 %v1718, %v1754
      %v1859 = vmul.f32 %v1719, %v1750
      %v1860 = vmul.f32 %v1720, %v1754
      %v1861 = vmul.f32 %v1721, %v1750
      %v1862 = vmul.f32 %v1722, %v1754
      %v1863 = vmul.f32 %v1723, %v1750
      %v1864 = vmul.f32 %v1724, %v1754
      %v1865 = vmul.f32 %v1725, %v1750
      %v1866 = vmul.f32 %v1726, %v1754
      %v1867 = vmul.f32 %v1727, %v1750
      %v1868 = vmul.f32 %v1728, %v1754
      %v1869 = vmul.f32 %v1729, %v1750
      %v1870 = vmul.f32 %v1730, %v1754
      %v1871 = vmul.f32 %v1731, %v1750
      %v1872 = vmul.f32 %v1732, %v1754
      %v1873 = vmul.f32 %v1733, %v1750
      %v1874 = vmul.f32 %v1734, %v1754
      %v1875 = vmul.f32 %v1735, %v1750
      %v1876 = vmul.f32 %v1736, %v1754
      %v1877 = vmul.f32 %v1737, %v1750
      %v1878 = vmul.f32 %v1738, %v1754
      %v1879 = vmul.f32 %v1739, %v1750
      %v1880 = vmul.f32 %v1740, %v1754
      %v1881 = vmul.f32 %v1741, %v1750
      %v1882 = vmul.f32 %v1742, %v1754
      %v1883 = vmul.f32 %v1743, %v1750
      %v1884 = vmul.f32 %v1744, %v1754
      %v1885 = vadd.f32 %v1757, %v1758
      %1886 = vadd.xlane.f32.xlu0 %v1885
      %v1887 = vpop.xlane.xlu0 %1886
      %v1888 = vadd.f32 %v1759, %v1760
      %1889 = vadd.xlane.f32.xlu0 %v1888
      %v1890 = vpop.xlane.xlu0 %1889
      %v1891 = vadd.f32 %v1761, %v1762
      %1892 = vadd.xlane.f32.xlu0 %v1891
      %v1893 = vpop.xlane.xlu0 %1892
      %v1894 = vadd.f32 %v1763, %v1764
      %1895 = vadd.xlane.f32.xlu0 %v1894
      %v1896 = vpop.xlane.xlu0 %1895
      %v1897 = vadd.f32 %v1765, %v1766
      %1898 = vadd.xlane.f32.xlu0 %v1897
      %v1899 = vpop.xlane.xlu0 %1898
      %v1900 = vadd.f32 %v1767, %v1768
      %1901 = vadd.xlane.f32.xlu0 %v1900
      %v1902 = vpop.xlane.xlu0 %1901
      %v1903 = vadd.f32 %v1769, %v1770
      %1904 = vadd.xlane.f32.xlu0 %v1903
      %v1905 = vpop.xlane.xlu0 %1904
      %v1906 = vadd.f32 %v1771, %v1772
      %1907 = vadd.xlane.f32.xlu0 %v1906
      %v1908 = vpop.xlane.xlu0 %1907
      %v1909 = vadd.f32 %v1773, %v1774
      %1910 = vadd.xlane.f32.xlu0 %v1909
      %v1911 = vpop.xlane.xlu0 %1910
      %v1912 = vadd.f32 %v1775, %v1776
      %1913 = vadd.xlane.f32.xlu0 %v1912
      %v1914 = vpop.xlane.xlu0 %1913
      %v1915 = vadd.f32 %v1777, %v1778
      %1916 = vadd.xlane.f32.xlu0 %v1915
      %v1917 = vpop.xlane.xlu0 %1916
      %v1918 = vadd.f32 %v1779, %v1780
      %1919 = vadd.xlane.f32.xlu0 %v1918
      %v1920 = vpop.xlane.xlu0 %1919
      %v1921 = vadd.f32 %v1781, %v1782
      %1922 = vadd.xlane.f32.xlu0 %v1921
      %v1923 = vpop.xlane.xlu0 %1922
      %v1924 = vadd.f32 %v1783, %v1784
      %1925 = vadd.xlane.f32.xlu0 %v1924
      %v1926 = vpop.xlane.xlu0 %1925
      %v1927 = vadd.f32 %v1785, %v1786
      %1928 = vadd.xlane.f32.xlu0 %v1927
      %v1929 = vpop.xlane.xlu0 %1928
      %v1930 = vadd.f32 %v1787, %v1788
      %1931 = vadd.xlane.f32.xlu0 %v1930
      %v1932 = vpop.xlane.xlu0 %1931
      %v1933 = vadd.f32 %v1789, %v1790
      %1934 = vadd.xlane.f32.xlu0 %v1933
      %v1935 = vpop.xlane.xlu0 %1934
      %v1936 = vadd.f32 %v1791, %v1792
      %1937 = vadd.xlane.f32.xlu0 %v1936
      %v1938 = vpop.xlane.xlu0 %1937
      %v1939 = vadd.f32 %v1793, %v1794
      %1940 = vadd.xlane.f32.xlu0 %v1939
      %v1941 = vpop.xlane.xlu0 %1940
      %v1942 = vadd.f32 %v1795, %v1796
      %1943 = vadd.xlane.f32.xlu0 %v1942
      %v1944 = vpop.xlane.xlu0 %1943
      %v1945 = vadd.f32 %v1797, %v1798
      %1946 = vadd.xlane.f32.xlu0 %v1945
      %v1947 = vpop.xlane.xlu0 %1946
      %v1948 = vadd.f32 %v1799, %v1800
      %1949 = vadd.xlane.f32.xlu0 %v1948
      %v1950 = vpop.xlane.xlu0 %1949
      %v1951 = vadd.f32 %v1801, %v1802
      %1952 = vadd.xlane.f32.xlu0 %v1951
      %v1953 = vpop.xlane.xlu0 %1952
      %v1954 = vadd.f32 %v1803, %v1804
      %1955 = vadd.xlane.f32.xlu0 %v1954
      %v1956 = vpop.xlane.xlu0 %1955
      %v1957 = vadd.f32 %v1805, %v1806
      %1958 = vadd.xlane.f32.xlu0 %v1957
      %v1959 = vpop.xlane.xlu0 %1958
      %v1960 = vadd.f32 %v1807, %v1808
      %1961 = vadd.xlane.f32.xlu0 %v1960
      %v1962 = vpop.xlane.xlu0 %1961
      %v1963 = vadd.f32 %v1809, %v1810
      %1964 = vadd.xlane.f32.xlu0 %v1963
      %v1965 = vpop.xlane.xlu0 %1964
      %v1966 = vadd.f32 %v1811, %v1812
      %1967 = vadd.xlane.f32.xlu0 %v1966
      %v1968 = vpop.xlane.xlu0 %1967
      %v1969 = vadd.f32 %v1813, %v1814
      %1970 = vadd.xlane.f32.xlu0 %v1969
      %v1971 = vpop.xlane.xlu0 %1970
      %v1972 = vadd.f32 %v1815, %v1816
      %1973 = vadd.xlane.f32.xlu0 %v1972
      %v1974 = vpop.xlane.xlu0 %1973
      %v1975 = vadd.f32 %v1817, %v1818
      %1976 = vadd.xlane.f32.xlu0 %v1975
      %v1977 = vpop.xlane.xlu0 %1976
      %v1978 = vadd.f32 %v1819, %v1820
      %1979 = vadd.xlane.f32.xlu0 %v1978
      %v1980 = vpop.xlane.xlu0 %1979
      %v1981 = vadd.f32 %v1821, %v1822
      %1982 = vadd.xlane.f32.xlu0 %v1981
      %v1983 = vpop.xlane.xlu0 %1982
      %v1984 = vadd.f32 %v1823, %v1824
      %1985 = vadd.xlane.f32.xlu0 %v1984
      %v1986 = vpop.xlane.xlu0 %1985
      %v1987 = vadd.f32 %v1825, %v1826
      %1988 = vadd.xlane.f32.xlu0 %v1987
      %v1989 = vpop.xlane.xlu0 %1988
      %v1990 = vadd.f32 %v1827, %v1828
      %1991 = vadd.xlane.f32.xlu0 %v1990
      %v1992 = vpop.xlane.xlu0 %1991
      %v1993 = vadd.f32 %v1829, %v1830
      %1994 = vadd.xlane.f32.xlu0 %v1993
      %v1995 = vpop.xlane.xlu0 %1994
      %v1996 = vadd.f32 %v1831, %v1832
      %1997 = vadd.xlane.f32.xlu0 %v1996
      %v1998 = vpop.xlane.xlu0 %1997
      %v1999 = vadd.f32 %v1833, %v1834
      %2000 = vadd.xlane.f32.xlu0 %v1999
      %v2001 = vpop.xlane.xlu0 %2000
      %v2002 = vadd.f32 %v1835, %v1836
      %2003 = vadd.xlane.f32.xlu0 %v2002
      %v2004 = vpop.xlane.xlu0 %2003
      %v2005 = vadd.f32 %v1837, %v1838
      %2006 = vadd.xlane.f32.xlu0 %v2005
      %v2007 = vpop.xlane.xlu0 %2006
      %v2008 = vadd.f32 %v1839, %v1840
      %2009 = vadd.xlane.f32.xlu0 %v2008
      %v2010 = vpop.xlane.xlu0 %2009
      %v2011 = vadd.f32 %v1841, %v1842
      %2012 = vadd.xlane.f32.xlu0 %v2011
      %v2013 = vpop.xlane.xlu0 %2012
      %v2014 = vadd.f32 %v1843, %v1844
      %2015 = vadd.xlane.f32.xlu0 %v2014
      %v2016 = vpop.xlane.xlu0 %2015
      %v2017 = vadd.f32 %v1845, %v1846
      %2018 = vadd.xlane.f32.xlu0 %v2017
      %v2019 = vpop.xlane.xlu0 %2018
      %v2020 = vadd.f32 %v1847, %v1848
      %2021 = vadd.xlane.f32.xlu0 %v2020
      %v2022 = vpop.xlane.xlu0 %2021
      %v2023 = vadd.f32 %v1849, %v1850
      %2024 = vadd.xlane.f32.xlu0 %v2023
      %v2025 = vpop.xlane.xlu0 %2024
      %v2026 = vadd.f32 %v1851, %v1852
      %2027 = vadd.xlane.f32.xlu0 %v2026
      %v2028 = vpop.xlane.xlu0 %2027
      %v2029 = vadd.f32 %v1853, %v1854
      %2030 = vadd.xlane.f32.xlu0 %v2029
      %v2031 = vpop.xlane.xlu0 %2030
      %v2032 = vadd.f32 %v1855, %v1856
      %2033 = vadd.xlane.f32.xlu0 %v2032
      %v2034 = vpop.xlane.xlu0 %2033
      %v2035 = vadd.f32 %v1857, %v1858
      %2036 = vadd.xlane.f32.xlu0 %v2035
      %v2037 = vpop.xlane.xlu0 %2036
      %v2038 = vadd.f32 %v1859, %v1860
      %2039 = vadd.xlane.f32.xlu0 %v2038
      %v2040 = vpop.xlane.xlu0 %2039
      %v2041 = vadd.f32 %v1861, %v1862
      %2042 = vadd.xlane.f32.xlu0 %v2041
      %v2043 = vpop.xlane.xlu0 %2042
      %v2044 = vadd.f32 %v1863, %v1864
      %2045 = vadd.xlane.f32.xlu0 %v2044
      %v2046 = vpop.xlane.xlu0 %2045
      %v2047 = vadd.f32 %v1865, %v1866
      %2048 = vadd.xlane.f32.xlu0 %v2047
      %v2049 = vpop.xlane.xlu0 %2048
      %v2050 = vadd.f32 %v1867, %v1868
      %2051 = vadd.xlane.f32.xlu0 %v2050
      %v2052 = vpop.xlane.xlu0 %2051
      %v2053 = vadd.f32 %v1869, %v1870
      %2054 = vadd.xlane.f32.xlu0 %v2053
      %v2055 = vpop.xlane.xlu0 %2054
      %v2056 = vadd.f32 %v1871, %v1872
      %2057 = vadd.xlane.f32.xlu0 %v2056
      %v2058 = vpop.xlane.xlu0 %2057
      %v2059 = vadd.f32 %v1873, %v1874
      %2060 = vadd.xlane.f32.xlu0 %v2059
      %v2061 = vpop.xlane.xlu0 %2060
      %v2062 = vadd.f32 %v1875, %v1876
      %2063 = vadd.xlane.f32.xlu0 %v2062
      %v2064 = vpop.xlane.xlu0 %2063
      %v2065 = vadd.f32 %v1877, %v1878
      %2066 = vadd.xlane.f32.xlu0 %v2065
      %v2067 = vpop.xlane.xlu0 %2066
      %v2068 = vadd.f32 %v1879, %v1880
      %2069 = vadd.xlane.f32.xlu0 %v2068
      %v2070 = vpop.xlane.xlu0 %2069
      %v2071 = vadd.f32 %v1881, %v1882
      %2072 = vadd.xlane.f32.xlu0 %v2071
      %v2073 = vpop.xlane.xlu0 %2072
      %v2074 = vadd.f32 %v1883, %v1884
      %2075 = vadd.xlane.f32.xlu0 %v2074
      %v2076 = vpop.xlane.xlu0 %2075
      %v2077 = vld [vmem:[#allocation2] sm:$0x1]
      %v2079 = vlaneseq
      %v2080 = vshrl.u32 %v2079, 7
      %v2081 = vsub.s32 0, %v2080
      %v2082 = vrot.slane %v2077, %v2081
      %v2084 = vadd.f32 %v1887, %v2082
      %v2085 = vadd.f32 %v1890, %v2082
      %v2086 = vadd.f32 %v1893, %v2082
      %v2087 = vadd.f32 %v1896, %v2082
      %v2088 = vadd.f32 %v1899, %v2082
      %v2089 = vadd.f32 %v1902, %v2082
      %v2090 = vadd.f32 %v1905, %v2082
      %v2091 = vadd.f32 %v1908, %v2082
      %v2092 = vadd.f32 %v1911, %v2082
      %v2093 = vadd.f32 %v1914, %v2082
      %v2094 = vadd.f32 %v1917, %v2082
      %v2095 = vadd.f32 %v1920, %v2082
      %v2096 = vadd.f32 %v1923, %v2082
      %v2097 = vadd.f32 %v1926, %v2082
      %v2098 = vadd.f32 %v1929, %v2082
      %v2099 = vadd.f32 %v1932, %v2082
      %v2100 = vadd.f32 %v1935, %v2082
      %v2101 = vadd.f32 %v1938, %v2082
      %v2102 = vadd.f32 %v1941, %v2082
      %v2103 = vadd.f32 %v1944, %v2082
      %v2104 = vadd.f32 %v1947, %v2082
      %v2105 = vadd.f32 %v1950, %v2082
      %v2106 = vadd.f32 %v1953, %v2082
      %v2107 = vadd.f32 %v1956, %v2082
      %v2108 = vadd.f32 %v1959, %v2082
      %v2109 = vadd.f32 %v1962, %v2082
      %v2110 = vadd.f32 %v1965, %v2082
      %v2111 = vadd.f32 %v1968, %v2082
      %v2112 = vadd.f32 %v1971, %v2082
      %v2113 = vadd.f32 %v1974, %v2082
      %v2114 = vadd.f32 %v1977, %v2082
      %v2115 = vadd.f32 %v1980, %v2082
      %v2116 = vadd.f32 %v1983, %v2082
      %v2117 = vadd.f32 %v1986, %v2082
      %v2118 = vadd.f32 %v1989, %v2082
      %v2119 = vadd.f32 %v1992, %v2082
      %v2120 = vadd.f32 %v1995, %v2082
      %v2121 = vadd.f32 %v1998, %v2082
      %v2122 = vadd.f32 %v2001, %v2082
      %v2123 = vadd.f32 %v2004, %v2082
      %v2124 = vadd.f32 %v2007, %v2082
      %v2125 = vadd.f32 %v2010, %v2082
      %v2126 = vadd.f32 %v2013, %v2082
      %v2127 = vadd.f32 %v2016, %v2082
      %v2128 = vadd.f32 %v2019, %v2082
      %v2129 = vadd.f32 %v2022, %v2082
      %v2130 = vadd.f32 %v2025, %v2082
      %v2131 = vadd.f32 %v2028, %v2082
      %v2132 = vadd.f32 %v2031, %v2082
      %v2133 = vadd.f32 %v2034, %v2082
      %v2134 = vadd.f32 %v2037, %v2082
      %v2135 = vadd.f32 %v2040, %v2082
      %v2136 = vadd.f32 %v2043, %v2082
      %v2137 = vadd.f32 %v2046, %v2082
      %v2138 = vadd.f32 %v2049, %v2082
      %v2139 = vadd.f32 %v2052, %v2082
      %v2140 = vadd.f32 %v2055, %v2082
      %v2141 = vadd.f32 %v2058, %v2082
      %v2142 = vadd.f32 %v2061, %v2082
      %v2143 = vadd.f32 %v2064, %v2082
      %v2144 = vadd.f32 %v2067, %v2082
      %v2145 = vadd.f32 %v2070, %v2082
      %v2146 = vadd.f32 %v2073, %v2082
      %v2147 = vadd.f32 %v2076, %v2082
      %vm2148 = vcmask 7168
      %2149 = vst.msk [vmem:[%s282] sm:$0xff] %vm2148, %v2084
      %2150 = vst.msk [vmem:[%s282 + $0x8] sm:$0xff] %vm2148, %v2085
      %2151 = vst.msk [vmem:[%s282 + $0x10] sm:$0xff] %vm2148, %v2086
      %2152 = vst.msk [vmem:[%s282 + $0x18] sm:$0xff] %vm2148, %v2087
      %2153 = vst.msk [vmem:[%s282 + $0x20] sm:$0xff] %vm2148, %v2088
      %2154 = vst.msk [vmem:[%s282 + $0x28] sm:$0xff] %vm2148, %v2089
      %2155 = vst.msk [vmem:[%s282 + $0x30] sm:$0xff] %vm2148, %v2090
      %2156 = vst.msk [vmem:[%s282 + $0x38] sm:$0xff] %vm2148, %v2091
      %2157 = vst.msk [vmem:[%s282 + $0x40] sm:$0xff] %vm2148, %v2092
      %2158 = vst.msk [vmem:[%s282 + $0x48] sm:$0xff] %vm2148, %v2093
      %2159 = vst.msk [vmem:[%s282 + $0x50] sm:$0xff] %vm2148, %v2094
      %2160 = vst.msk [vmem:[%s282 + $0x58] sm:$0xff] %vm2148, %v2095
      %2161 = vst.msk [vmem:[%s282 + $0x60] sm:$0xff] %vm2148, %v2096
      %2162 = vst.msk [vmem:[%s282 + $0x68] sm:$0xff] %vm2148, %v2097
      %2163 = vst.msk [vmem:[%s282 + $0x70] sm:$0xff] %vm2148, %v2098
      %2164 = vst.msk [vmem:[%s282 + $0x78] sm:$0xff] %vm2148, %v2099
      %2165 = vst.msk [vmem:[%s282 + $0x80] sm:$0xff] %vm2148, %v2100
      %2166 = vst.msk [vmem:[%s282 + $0x88] sm:$0xff] %vm2148, %v2101
      %2167 = vst.msk [vmem:[%s282 + $0x90] sm:$0xff] %vm2148, %v2102
      %2168 = vst.msk [vmem:[%s282 + $0x98] sm:$0xff] %vm2148, %v2103
      %2169 = vst.msk [vmem:[%s282 + $0xa0] sm:$0xff] %vm2148, %v2104
      %2170 = vst.msk [vmem:[%s282 + $0xa8] sm:$0xff] %vm2148, %v2105
      %2171 = vst.msk [vmem:[%s282 + $0xb0] sm:$0xff] %vm2148, %v2106
      %2172 = vst.msk [vmem:[%s282 + $0xb8] sm:$0xff] %vm2148, %v2107
      %2173 = vst.msk [vmem:[%s282 + $0xc0] sm:$0xff] %vm2148, %v2108
      %2174 = vst.msk [vmem:[%s282 + $0xc8] sm:$0xff] %vm2148, %v2109
      %2175 = vst.msk [vmem:[%s282 + $0xd0] sm:$0xff] %vm2148, %v2110
      %2176 = vst.msk [vmem:[%s282 + $0xd8] sm:$0xff] %vm2148, %v2111
      %2177 = vst.msk [vmem:[%s282 + $0xe0] sm:$0xff] %vm2148, %v2112
      %2178 = vst.msk [vmem:[%s282 + $0xe8] sm:$0xff] %vm2148, %v2113
      %2179 = vst.msk [vmem:[%s282 + $0xf0] sm:$0xff] %vm2148, %v2114
      %2180 = vst.msk [vmem:[%s282 + $0xf8] sm:$0xff] %vm2148, %v2115
      %2181 = vst.msk [vmem:[%s282 + $0x100] sm:$0xff] %vm2148, %v2116
      %2182 = vst.msk [vmem:[%s282 + $0x108] sm:$0xff] %vm2148, %v2117
      %2183 = vst.msk [vmem:[%s282 + $0x110] sm:$0xff] %vm2148, %v2118
      %2184 = vst.msk [vmem:[%s282 + $0x118] sm:$0xff] %vm2148, %v2119
      %2185 = vst.msk [vmem:[%s282 + $0x120] sm:$0xff] %vm2148, %v2120
      %2186 = vst.msk [vmem:[%s282 + $0x128] sm:$0xff] %vm2148, %v2121
      %2187 = vst.msk [vmem:[%s282 + $0x130] sm:$0xff] %vm2148, %v2122
      %2188 = vst.msk [vmem:[%s282 + $0x138] sm:$0xff] %vm2148, %v2123
      %2189 = vst.msk [vmem:[%s282 + $0x140] sm:$0xff] %vm2148, %v2124
      %2190 = vst.msk [vmem:[%s282 + $0x148] sm:$0xff] %vm2148, %v2125
      %2191 = vst.msk [vmem:[%s282 + $0x150] sm:$0xff] %vm2148, %v2126
      %2192 = vst.msk [vmem:[%s282 + $0x158] sm:$0xff] %vm2148, %v2127
      %2193 = vst.msk [vmem:[%s282 + $0x160] sm:$0xff] %vm2148, %v2128
      %2194 = vst.msk [vmem:[%s282 + $0x168] sm:$0xff] %vm2148, %v2129
      %2195 = vst.msk [vmem:[%s282 + $0x170] sm:$0xff] %vm2148, %v2130
      %2196 = vst.msk [vmem:[%s282 + $0x178] sm:$0xff] %vm2148, %v2131
      %2197 = vst.msk [vmem:[%s282 + $0x180] sm:$0xff] %vm2148, %v2132
      %2198 = vst.msk [vmem:[%s282 + $0x188] sm:$0xff] %vm2148, %v2133
      %2199 = vst.msk [vmem:[%s282 + $0x190] sm:$0xff] %vm2148, %v2134
      %2200 = vst.msk [vmem:[%s282 + $0x198] sm:$0xff] %vm2148, %v2135
      %2201 = vst.msk [vmem:[%s282 + $0x1a0] sm:$0xff] %vm2148, %v2136
      %2202 = vst.msk [vmem:[%s282 + $0x1a8] sm:$0xff] %vm2148, %v2137
      %2203 = vst.msk [vmem:[%s282 + $0x1b0] sm:$0xff] %vm2148, %v2138
      %2204 = vst.msk [vmem:[%s282 + $0x1b8] sm:$0xff] %vm2148, %v2139
      %2205 = vst.msk [vmem:[%s282 + $0x1c0] sm:$0xff] %vm2148, %v2140
      %2206 = vst.msk [vmem:[%s282 + $0x1c8] sm:$0xff] %vm2148, %v2141
      %2207 = vst.msk [vmem:[%s282 + $0x1d0] sm:$0xff] %vm2148, %v2142
      %2208 = vst.msk [vmem:[%s282 + $0x1d8] sm:$0xff] %vm2148, %v2143
      %2209 = vst.msk [vmem:[%s282 + $0x1e0] sm:$0xff] %vm2148, %v2144
      %2210 = vst.msk [vmem:[%s282 + $0x1e8] sm:$0xff] %vm2148, %v2145
      %2211 = vst.msk [vmem:[%s282 + $0x1f0] sm:$0xff] %vm2148, %v2146
      %2212 = vst.msk [vmem:[%s282 + $0x1f8] sm:$0xff] %vm2148, %v2147
      %s2213 = smul.u32 64, %s20
      %p2214 = scmp.lt.s32.totalorder %s2213, 127
      %s2215 = scalar_select %p2214, %s2213, 127
      %s2216 = smul.addr %s2215, 8
      %s2217 = scalar_lea.vmem %s7, %s2216
      // Predicated region
      $region49: #{tpu_custom_call.1} parent=47 // pred_check
        %p2218 = pneg %p190
      $region50: #{tpu_custom_call.1} parent=47 // pred_check_branch
        %2220 = sbr.rel (%p2218) target = $region52
      $region51: #{tpu_custom_call.1} parent=47 // pred_region
        %s2221 = smul.u32 64, %s20
      $region52: #{tpu_custom_call.1} parent=47 // pred_fallthru
        _
    $region48: #{tpu_custom_call.1} parent=5 // pred_fallthru
      _
    %p2222 = scmp.le.s32.totalorder 2, %s15
    // Predicated region
    $region53: #{tpu_custom_call.1} parent=5 // pred_check
      %p2223 = pneg %p2222
    $region54: #{tpu_custom_call.1} parent=5 // pred_check_branch
      %2225 = sbr.rel (%p2223) target = $region56
    $region55: #{tpu_custom_call.1} parent=5 // pred_region
      %s2226 = ssub.s32 %s15, 2
      // Predicated region
      $region57: #{tpu_custom_call.1} parent=55 // pred_check
        %p2227 = pneg %p196
      $region58: #{tpu_custom_call.1} parent=55 // pred_check_branch
        %2229 = sbr.rel (%p2227) target = $region60
      $region59: #{tpu_custom_call.1} parent=55 // pred_region
        %s2230 = smul.u32 64, %s21
        %p2231 = scmp.lt.s32.totalorder %s2230, 127
        %s2232 = scalar_select %p2231, %s2230, 127
        %s2233 = smul.addr %s2232, 8
        %s2234 = scalar_lea.vmem %s7, %s2233
      $region60: #{tpu_custom_call.1} parent=55 // pred_fallthru
        _
    $region56: #{tpu_custom_call.1} parent=5 // pred_fallthru
      _
  $region6: #{tpu_custom_call.1} parent=0 // loop_footer
    %s19 = sadd.s32 1, %s15
  $region7: #{tpu_custom_call.1} parent=0 // loop_footer_branch
    %14 = sbr.rel target = $region3
  $region8: #{tpu_custom_call.1} parent=0 // loop_exit
    _

</llo_original>
